<compile_context>
chip_gen: v7x
topology: tpu7x:2x2x1
jax: 0.10.0
libtpu: 0.0.40
codegen_flags: <defaults>
</compile_context>

<pallas_src>
import jax
import jax.numpy as jnp
from jax.experimental import pallas as pl
from jax.experimental.pallas import tpu as pltpu


# ----------------------------- kernel ---------------------------------------

def mlp_kernel(x_ref,
               w1_ref, b1_ref, w2_ref, b2_ref, w3_ref, b3_ref,
               w4_ref, b4_ref, w5_ref, b5_ref,
               out_ref):
    """5-layer MLP on one (tile_m, F_in) row tile. Weights bf16, biases f32."""
    h = jnp.dot(x_ref[...], w1_ref[...], preferred_element_type=jnp.float32)
    h = jnp.maximum(h + b1_ref[...], 0.0).astype(jnp.bfloat16)

    h = jnp.dot(h, w2_ref[...], preferred_element_type=jnp.float32)
    h = jnp.maximum(h + b2_ref[...], 0.0).astype(jnp.bfloat16)

    h = jnp.dot(h, w3_ref[...], preferred_element_type=jnp.float32)
    h = jnp.maximum(h + b3_ref[...], 0.0).astype(jnp.bfloat16)

    h = jnp.dot(h, w4_ref[...], preferred_element_type=jnp.float32)
    h = jnp.maximum(h + b4_ref[...], 0.0).astype(jnp.bfloat16)

    o = jnp.dot(h, w5_ref[...], preferred_element_type=jnp.float32) + b5_ref[...]
    out_ref[...] = o.astype(out_ref.dtype)   # lane-dense (128-padded) bf16 store


# ----------------------------- tiling ----------------------------------------

def _round_up(x, m):
    return ((x + m - 1) // m) * m


def choose_tile_m(batch, *, row_align=128, max_tile=1024, target_steps=8):
    """Batch-adaptive row tile.

    - multiple of 128 (sublane/lane friendly),
    - capped at `max_tile` (VMEM headroom on every generation, incl. v5e's
      16 MiB scoped default and v7x's 64 MiB physical VMEM),
    - small enough that the grid keeps ~target_steps steps (megacore sharding
      on v7x + input/output double-buffer overlap), without padding a small
      batch up to a huge tile.
    """
    b_aligned = _round_up(max(batch, 1), row_align)
    tile = _round_up(max(b_aligned // target_steps, 1), row_align)
    tile = min(tile, max_tile, b_aligned)
    return max(tile, row_align)


# ----------------------------- wrapper ---------------------------------------

def classifier_forward(x, kparams, class_num, *, tile_m=None):
    """Fused MLP over batch-row tiles. Returns [B, class_num] bf16 logits."""
    B, f_in = x.shape
    c_pad = kparams["w5"].shape[1]           # class dim padded to 128 lanes

    if tile_m is None:
        tile_m = choose_tile_m(B)

    # Pad batch only up to a multiple of the (adaptive) tile.
    pad_b = (-B) % tile_m
    xb = jnp.pad(x, ((0, pad_b), (0, 0))).astype(jnp.bfloat16)
    Bp = B + pad_b
    grid = (Bp // tile_m,)

    def rep(arr):                            # weights/biases: same block every step
        return pl.BlockSpec(arr.shape, lambda i: (0, 0))

    operands = [xb,
                kparams["w1"], kparams["b1"],
                kparams["w2"], kparams["b2"],
                kparams["w3"], kparams["b3"],
                kparams["w4"], kparams["b4"],
                kparams["w5"], kparams["b5"]]

    in_specs = [pl.BlockSpec((tile_m, f_in), lambda i: (i, 0))] + \
               [rep(o) for o in operands[1:]]

    # Advisory cost estimate so XLA schedules this tiny custom call sensibly.
    flops = 2 * Bp * (f_in * 256 + 256 * 128 + 128 * 64 + 64 * 16 + 16 * c_pad)
    param_bytes = sum(int(v.size) * v.dtype.itemsize for v in kparams.values())
    bytes_accessed = (int(xb.size) * xb.dtype.itemsize      # activations in
                      + param_bytes                          # weights/biases
                      + Bp * c_pad * 2)                      # bf16 logits out
    cost = pl.CostEstimate(flops=flops, transcendentals=0,
                           bytes_accessed=bytes_accessed)

    out = pl.pallas_call(
        mlp_kernel,
        out_shape=jax.ShapeDtypeStruct((Bp, c_pad), jnp.bfloat16),
        grid=grid,
        in_specs=in_specs,
        out_specs=pl.BlockSpec((tile_m, c_pad), lambda i: (i, 0)),
        compiler_params=pltpu.CompilerParams(
            dimension_semantics=("parallel",)),
        cost_estimate=cost,
    )(*operands)

    return out[:B, :class_num]


# --------------------- parameter init / preparation --------------------------

def init_params(key, input_bands, class_num):
    """PyTorch-Linear-style init; weights stored as [in, out] (y = x @ W + b)."""
    dims = [input_bands, 32 * 8, 32 * 4, 32 * 2, 16, class_num]
    ks = jax.random.split(key, 2 * (len(dims) - 1))
    p = {}
    for li in range(len(dims) - 1):
        fan_in, fan_out = dims[li], dims[li + 1]
        bound = 1.0 / jnp.sqrt(float(fan_in))
        p[f"w{li + 1}"] = jax.random.uniform(
            ks[2 * li], (fan_in, fan_out), jnp.float32, -bound, bound)
        p[f"b{li + 1}"] = jax.random.uniform(
            ks[2 * li + 1], (fan_out,), jnp.float32, -bound, bound)
    return p


def prepare_kernel_params(p, class_num, lane=128):
    """bf16 weights, f32 row-vector biases; pad last layer's output dim to `lane`."""
    c_pad = max(lane, ((class_num + lane - 1) // lane) * lane)
    kp = {}
    for li in range(1, 5):
        kp[f"w{li}"] = p[f"w{li}"].astype(jnp.bfloat16)
        kp[f"b{li}"] = p[f"b{li}"].reshape(1, -1).astype(jnp.float32)
    w5 = jnp.pad(p["w5"], ((0, 0), (0, c_pad - class_num)))
    b5 = jnp.pad(p["b5"], ((0, c_pad - class_num),))
    kp["w5"] = w5.astype(jnp.bfloat16)
    kp["b5"] = b5.reshape(1, -1).astype(jnp.float32)
    return kp


# ----------------------------- references ------------------------------------

def reference_forward_f32(x, p):
    """Exact f32 forward of the PyTorch module."""
    h = jnp.maximum(x @ p["w1"] + p["b1"], 0.0)
    h = jnp.maximum(h @ p["w2"] + p["b2"], 0.0)
    h = jnp.maximum(h @ p["w3"] + p["b3"], 0.0)
    h = jnp.maximum(h @ p["w4"] + p["b4"], 0.0)
    return h @ p["w5"] + p["b5"]


def reference_forward_bf16(x, p):
    """Same math with bf16 matmul inputs / f32 accumulation (kernel precision)."""
    def lin(h, w, b):
        return jnp.dot(h.astype(jnp.bfloat16), w.astype(jnp.bfloat16),
                       preferred_element_type=jnp.float32) + b
    h = jnp.maximum(lin(x, p["w1"], p["b1"]), 0.0)
    h = jnp.maximum(lin(h, p["w2"], p["b2"]), 0.0)
    h = jnp.maximum(lin(h, p["w3"], p["b3"]), 0.0)
    h = jnp.maximum(lin(h, p["w4"], p["b4"]), 0.0)
    return lin(h, p["w5"], p["b5"])


# ------------------------------- main -----------------------------------------

if __name__ == "__main__":
    INPUT_BANDS = 8
    CLASS_NUM = 10
    BATCH = 256          # adaptive tile_m -> 128-row tiles, grid=(2,), "parallel"

    key = jax.random.PRNGKey(0)
    k_x, k_p = jax.random.split(key)

    x = jax.random.normal(k_x, (BATCH, INPUT_BANDS), jnp.float32)
    params = init_params(k_p, INPUT_BANDS, CLASS_NUM)
    kparams = prepare_kernel_params(params, CLASS_NUM)

    out = classifier_forward(x, kparams, CLASS_NUM)
    out = jax.block_until_ready(out)
    assert out.shape == (BATCH, CLASS_NUM)
    assert out.dtype == jnp.bfloat16
    out_f32 = out.astype(jnp.float32)

    # Check vs a JAX reference at matching (bf16 matmul, bf16 store) precision.
    ref_bf16 = reference_forward_bf16(x, params).astype(jnp.bfloat16).astype(jnp.float32)
    assert jnp.allclose(out_f32, ref_bf16, atol=2e-2, rtol=2e-2), \
        "mismatch vs bf16-precision reference"

    # Loose sanity check vs the exact f32 reference (bf16 rounding only).
    ref_f32 = reference_forward_f32(x, params)
    assert jnp.allclose(out_f32, ref_f32, atol=8e-2, rtol=8e-2), \
        "mismatch vs f32 reference"

    print("KERNEL_OK")
</pallas_src>

<mosaic_0001>
module attributes {stable_mosaic.version = 11 : i64} {
  func.func @mlp_kernel(%arg0: i32, %arg1: memref<128x8xbf16, #tpu.memory_space<vmem>>, %arg2: memref<8x256xbf16, #tpu.memory_space<vmem>>, %arg3: memref<1x256xf32, #tpu.memory_space<vmem>>, %arg4: memref<256x128xbf16, #tpu.memory_space<vmem>>, %arg5: memref<1x128xf32, #tpu.memory_space<vmem>>, %arg6: memref<128x64xbf16, #tpu.memory_space<vmem>>, %arg7: memref<1x64xf32, #tpu.memory_space<vmem>>, %arg8: memref<64x16xbf16, #tpu.memory_space<vmem>>, %arg9: memref<1x16xf32, #tpu.memory_space<vmem>>, %arg10: memref<16x128xbf16, #tpu.memory_space<vmem>>, %arg11: memref<1x128xf32, #tpu.memory_space<vmem>>, %arg12: memref<128x128xbf16, #tpu.memory_space<vmem>>) attributes {dimension_semantics = [#tpu.dimension_semantics<parallel>], iteration_bounds = array<i64: 2>, scalar_prefetch = 0 : i64, scratch_operands = 0 : i64, tpu.core_type = #tpu.core_type<tc>, window_params = [{transform_indices = @transform_0, window_bounds = array<i64: 128, 8>}, {pipeline_mode = #tpu.pipeline_mode<synchronous>, transform_indices = @transform_1, window_bounds = array<i64: 8, 256>}, {pipeline_mode = #tpu.pipeline_mode<synchronous>, transform_indices = @transform_2, window_bounds = array<i64: 1, 256>}, {pipeline_mode = #tpu.pipeline_mode<synchronous>, transform_indices = @transform_3, window_bounds = array<i64: 256, 128>}, {pipeline_mode = #tpu.pipeline_mode<synchronous>, transform_indices = @transform_4, window_bounds = array<i64: 1, 128>}, {pipeline_mode = #tpu.pipeline_mode<synchronous>, transform_indices = @transform_5, window_bounds = array<i64: 128, 64>}, {pipeline_mode = #tpu.pipeline_mode<synchronous>, transform_indices = @transform_6, window_bounds = array<i64: 1, 64>}, {pipeline_mode = #tpu.pipeline_mode<synchronous>, transform_indices = @transform_7, window_bounds = array<i64: 64, 16>}, {pipeline_mode = #tpu.pipeline_mode<synchronous>, transform_indices = @transform_8, window_bounds = array<i64: 1, 16>}, {pipeline_mode = #tpu.pipeline_mode<synchronous>, transform_indices = @transform_9, window_bounds = array<i64: 16, 128>}, {pipeline_mode = #tpu.pipeline_mode<synchronous>, transform_indices = @transform_10, window_bounds = array<i64: 1, 128>}, {transform_indices = @transform_11, window_bounds = array<i64: 128, 128>}]} {
    %c0 = arith.constant 0 : index
    %c0_0 = arith.constant 0 : index
    %0 = vector.load %arg1[%c0, %c0_0] : memref<128x8xbf16, #tpu.memory_space<vmem>>, vector<128x8xbf16>
    %c0_1 = arith.constant 0 : index
    %c0_2 = arith.constant 0 : index
    %1 = vector.load %arg2[%c0_1, %c0_2] : memref<8x256xbf16, #tpu.memory_space<vmem>>, vector<8x256xbf16>
    %cst = arith.constant dense<0.000000e+00> : vector<128x256xf32>
    %2 = tpu.matmul %0, %1, %cst {dimension_numbers = #tpu.dot_dimension_numbers<[1], [0], [0], [1], [0, 0, 1, 1], [], []>} : vector<128x8xbf16>, vector<8x256xbf16>, vector<128x256xf32> -> vector<128x256xf32>
    %c0_3 = arith.constant 0 : index
    %c0_4 = arith.constant 0 : index
    %3 = vector.load %arg3[%c0_3, %c0_4] : memref<1x256xf32, #tpu.memory_space<vmem>>, vector<1x256xf32>
    %4 = vector.broadcast %3 : vector<1x256xf32> to vector<128x256xf32>
    %5 = arith.addf %2, %4 : vector<128x256xf32>
    %cst_5 = arith.constant 0.000000e+00 : f32
    %6 = vector.broadcast %cst_5 : f32 to vector<128x256xf32>
    %7 = arith.maximumf %5, %6 : vector<128x256xf32>
    %8 = arith.truncf %7 : vector<128x256xf32> to vector<128x256xbf16>
    %c0_6 = arith.constant 0 : index
    %c0_7 = arith.constant 0 : index
    %9 = vector.load %arg4[%c0_6, %c0_7] : memref<256x128xbf16, #tpu.memory_space<vmem>>, vector<256x128xbf16>
    %cst_8 = arith.constant dense<0.000000e+00> : vector<128x128xf32>
    %10 = tpu.matmul %8, %9, %cst_8 {dimension_numbers = #tpu.dot_dimension_numbers<[1], [0], [0], [1], [0, 0, 1, 1], [], []>} : vector<128x256xbf16>, vector<256x128xbf16>, vector<128x128xf32> -> vector<128x128xf32>
    %c0_9 = arith.constant 0 : index
    %c0_10 = arith.constant 0 : index
    %11 = vector.load %arg5[%c0_9, %c0_10] : memref<1x128xf32, #tpu.memory_space<vmem>>, vector<1x128xf32>
    %12 = vector.broadcast %11 : vector<1x128xf32> to vector<128x128xf32>
    %13 = arith.addf %10, %12 : vector<128x128xf32>
    %cst_11 = arith.constant 0.000000e+00 : f32
    %14 = vector.broadcast %cst_11 : f32 to vector<128x128xf32>
    %15 = arith.maximumf %13, %14 : vector<128x128xf32>
    %16 = arith.truncf %15 : vector<128x128xf32> to vector<128x128xbf16>
    %c0_12 = arith.constant 0 : index
    %c0_13 = arith.constant 0 : index
    %17 = vector.load %arg6[%c0_12, %c0_13] : memref<128x64xbf16, #tpu.memory_space<vmem>>, vector<128x64xbf16>
    %cst_14 = arith.constant dense<0.000000e+00> : vector<128x64xf32>
    %18 = tpu.matmul %16, %17, %cst_14 {dimension_numbers = #tpu.dot_dimension_numbers<[1], [0], [0], [1], [0, 0, 1, 1], [], []>} : vector<128x128xbf16>, vector<128x64xbf16>, vector<128x64xf32> -> vector<128x64xf32>
    %c0_15 = arith.constant 0 : index
    %c0_16 = arith.constant 0 : index
    %19 = vector.load %arg7[%c0_15, %c0_16] : memref<1x64xf32, #tpu.memory_space<vmem>>, vector<1x64xf32>
    %20 = vector.broadcast %19 : vector<1x64xf32> to vector<128x64xf32>
    %21 = arith.addf %18, %20 : vector<128x64xf32>
    %cst_17 = arith.constant 0.000000e+00 : f32
    %22 = vector.broadcast %cst_17 : f32 to vector<128x64xf32>
    %23 = arith.maximumf %21, %22 : vector<128x64xf32>
    %24 = arith.truncf %23 : vector<128x64xf32> to vector<128x64xbf16>
    %c0_18 = arith.constant 0 : index
    %c0_19 = arith.constant 0 : index
    %25 = vector.load %arg8[%c0_18, %c0_19] : memref<64x16xbf16, #tpu.memory_space<vmem>>, vector<64x16xbf16>
    %cst_20 = arith.constant dense<0.000000e+00> : vector<128x16xf32>
    %26 = tpu.matmul %24, %25, %cst_20 {dimension_numbers = #tpu.dot_dimension_numbers<[1], [0], [0], [1], [0, 0, 1, 1], [], []>} : vector<128x64xbf16>, vector<64x16xbf16>, vector<128x16xf32> -> vector<128x16xf32>
    %c0_21 = arith.constant 0 : index
    %c0_22 = arith.constant 0 : index
    %27 = vector.load %arg9[%c0_21, %c0_22] : memref<1x16xf32, #tpu.memory_space<vmem>>, vector<1x16xf32>
    %28 = vector.broadcast %27 : vector<1x16xf32> to vector<128x16xf32>
    %29 = arith.addf %26, %28 : vector<128x16xf32>
    %cst_23 = arith.constant 0.000000e+00 : f32
    %30 = vector.broadcast %cst_23 : f32 to vector<128x16xf32>
    %31 = arith.maximumf %29, %30 : vector<128x16xf32>
    %32 = arith.truncf %31 : vector<128x16xf32> to vector<128x16xbf16>
    %c0_24 = arith.constant 0 : index
    %c0_25 = arith.constant 0 : index
    %33 = vector.load %arg10[%c0_24, %c0_25] : memref<16x128xbf16, #tpu.memory_space<vmem>>, vector<16x128xbf16>
    %cst_26 = arith.constant dense<0.000000e+00> : vector<128x128xf32>
    %34 = tpu.matmul %32, %33, %cst_26 {dimension_numbers = #tpu.dot_dimension_numbers<[1], [0], [0], [1], [0, 0, 1, 1], [], []>} : vector<128x16xbf16>, vector<16x128xbf16>, vector<128x128xf32> -> vector<128x128xf32>
    %c0_27 = arith.constant 0 : index
    %c0_28 = arith.constant 0 : index
    %35 = vector.load %arg11[%c0_27, %c0_28] : memref<1x128xf32, #tpu.memory_space<vmem>>, vector<1x128xf32>
    %36 = vector.broadcast %35 : vector<1x128xf32> to vector<128x128xf32>
    %37 = arith.addf %34, %36 : vector<128x128xf32>
    %38 = arith.truncf %37 : vector<128x128xf32> to vector<128x128xbf16>
    %c0_29 = arith.constant 0 : index
    %c0_30 = arith.constant 0 : index
    %39 = vector.load %arg12[%c0_29, %c0_30] : memref<128x128xbf16, #tpu.memory_space<vmem>>, vector<128x128xbf16>
    tpu.vector_store %arg12[%c0_29, %c0_30], %38 {strides = array<i32>} : memref<128x128xbf16, #tpu.memory_space<vmem>>, vector<128x128xbf16>,
    return
  }
  func.func @transform_0(%arg0: i32) -> (i32, i32) {
    %c0_i32 = arith.constant 0 : i32
    %c0_i32_0 = arith.constant 0 : i32
    return %arg0, %c0_i32 : i32, i32
  }
  func.func @transform_1(%arg0: i32) -> (i32, i32) {
    %c0_i32 = arith.constant 0 : i32
    %c0_i32_0 = arith.constant 0 : i32
    %c0_i32_1 = arith.constant 0 : i32
    return %c0_i32, %c0_i32_0 : i32, i32
  }
  func.func @transform_2(%arg0: i32) -> (i32, i32) {
    %c0_i32 = arith.constant 0 : i32
    %c0_i32_0 = arith.constant 0 : i32
    %c0_i32_1 = arith.constant 0 : i32
    return %c0_i32, %c0_i32_0 : i32, i32
  }
  func.func @transform_3(%arg0: i32) -> (i32, i32) {
    %c0_i32 = arith.constant 0 : i32
    %c0_i32_0 = arith.constant 0 : i32
    %c0_i32_1 = arith.constant 0 : i32
    return %c0_i32, %c0_i32_0 : i32, i32
  }
  func.func @transform_4(%arg0: i32) -> (i32, i32) {
    %c0_i32 = arith.constant 0 : i32
    %c0_i32_0 = arith.constant 0 : i32
    %c0_i32_1 = arith.constant 0 : i32
    return %c0_i32, %c0_i32_0 : i32, i32
  }
  func.func @transform_5(%arg0: i32) -> (i32, i32) {
    %c0_i32 = arith.constant 0 : i32
    %c0_i32_0 = arith.constant 0 : i32
    %c0_i32_1 = arith.constant 0 : i32
    return %c0_i32, %c0_i32_0 : i32, i32
  }
  func.func @transform_6(%arg0: i32) -> (i32, i32) {
    %c0_i32 = arith.constant 0 : i32
    %c0_i32_0 = arith.constant 0 : i32
    %c0_i32_1 = arith.constant 0 : i32
    return %c0_i32, %c0_i32_0 : i32, i32
  }
  func.func @transform_7(%arg0: i32) -> (i32, i32) {
    %c0_i32 = arith.constant 0 : i32
    %c0_i32_0 = arith.constant 0 : i32
    %c0_i32_1 = arith.constant 0 : i32
    return %c0_i32, %c0_i32_0 : i32, i32
  }
  func.func @transform_8(%arg0: i32) -> (i32, i32) {
    %c0_i32 = arith.constant 0 : i32
    %c0_i32_0 = arith.constant 0 : i32
    %c0_i32_1 = arith.constant 0 : i32
    return %c0_i32, %c0_i32_0 : i32, i32
  }
  func.func @transform_9(%arg0: i32) -> (i32, i32) {
    %c0_i32 = arith.constant 0 : i32
    %c0_i32_0 = arith.constant 0 : i32
    %c0_i32_1 = arith.constant 0 : i32
    return %c0_i32, %c0_i32_0 : i32, i32
  }
  func.func @transform_10(%arg0: i32) -> (i32, i32) {
    %c0_i32 = arith.constant 0 : i32
    %c0_i32_0 = arith.constant 0 : i32
    %c0_i32_1 = arith.constant 0 : i32
    return %c0_i32, %c0_i32_0 : i32, i32
  }
  func.func @transform_11(%arg0: i32) -> (i32, i32) {
    %c0_i32 = arith.constant 0 : i32
    %c0_i32_0 = arith.constant 0 : i32
    return %arg0, %c0_i32 : i32, i32
  }
}

</mosaic_0001>

<llo_original>
// kernel: tpu_custom_call.1
$region0: #{tpu_custom_call.1}
  #allocation0 [shape = 'u32[]', space=smem, size = 0x4, offset = 0x4, fixed_abs, tag = 'smem constant byte address 0x4 - core index']
  #allocation1 [shape = 'u32[144,128]{1,0:T(1,128)}', space=vmem, size = 0x12000, scoped, tag = 'internal scratch']
  %s0 = inlined_call_operand.vmem [shape: bf16[256,8], index: 0, kind: input, shape index: {}]
  %s1 = inlined_call_operand.vmem [shape: bf16[8,256], index: 1, kind: input, shape index: {}]
  %s2 = inlined_call_operand.vmem [shape: f32[1,256], index: 2, kind: input, shape index: {}]
  %s3 = inlined_call_operand.vmem [shape: bf16[256,128], index: 3, kind: input, shape index: {}]
  %s4 = inlined_call_operand.vmem [shape: f32[1,128], index: 4, kind: input, shape index: {}]
  %s5 = inlined_call_operand.vmem [shape: bf16[128,64], index: 5, kind: input, shape index: {}]
  %s6 = inlined_call_operand.vmem [shape: f32[1,64], index: 6, kind: input, shape index: {}]
  %s7 = inlined_call_operand.vmem [shape: bf16[64,16], index: 7, kind: input, shape index: {}]
  %s8 = inlined_call_operand.vmem [shape: f32[1,16], index: 8, kind: input, shape index: {}]
  %s9 = inlined_call_operand.vmem [shape: bf16[16,128], index: 9, kind: input, shape index: {}]
  %s10 = inlined_call_operand.vmem [shape: f32[1,128], index: 10, kind: input, shape index: {}]
  %s11 = inlined_call_operand.hbm [shape: bf16[256,128], index: 11, kind: output, shape index: {}]
  %s12 = sld [smem:[#allocation0]]
  $region77: #{tpu_custom_call.1} parent=0
    _
  %s14 = ssub.s32 1, %s12
  %s15 = scalar_select 0, %s14, %s12
  $region1: #{tpu_custom_call.1} parent=0
    #allocation2 [shape = 'u8[65536]{0}', space=vmem, size = 0x10000, scoped, tag = 'output window, operand 0']
    #allocation3 [shape = 's32[2]{0}', space=sflag, size = 0x8, scoped, tag = 'scoped memory for tpu_custom_call.1']
    %16 = vsyncpa [#allocation3], 0
    %s17 = scalar_lea.sflag [#allocation3], 1
    %18 = vsyncpa %s17, 0
    loop: start=0, step=1, limit=4
    $region2: #{tpu_custom_call.1} parent=1 // loop_pre_header
      _
    $region3: #{tpu_custom_call.1} parent=1 // loop_header
      %s20 = sphi 0, %s24
      %p21 = scmp.ge.s32.totalorder %s20, 4
      %s30 = sphi 0, %s32
      %s33 = sphi 0, %s30
      %s34 = sphi 0, %s33
      %s50 = sphi 0, %s34
      %s54 = sphi 0, %s54
      %s56 = sphi 0, %s54
      %s57 = sphi 0, %s56
      %s71 = sphi 0, %s57
      %s75 = sphi 0, %s75
      %s77 = sphi 0, %s75
      %s78 = sphi 0, %s77
      %s92 = sphi 0, %s78
      %s96 = sphi 0, %s96
      %s98 = sphi 0, %s96
      %s99 = sphi 0, %s98
      %s113 = sphi 0, %s99
      %s117 = sphi 0, %s117
      %s119 = sphi 0, %s117
      %s120 = sphi 0, %s119
      %s134 = sphi 0, %s120
      %s138 = sphi 0, %s138
      %s140 = sphi 0, %s138
      %s141 = sphi 0, %s140
      %s155 = sphi 0, %s141
      %s159 = sphi 0, %s159
      %s161 = sphi 0, %s159
      %s162 = sphi 0, %s161
      %s176 = sphi 0, %s162
      %s180 = sphi 0, %s180
      %s182 = sphi 0, %s180
      %s183 = sphi 0, %s182
      %s197 = sphi 0, %s183
      %s201 = sphi 0, %s201
      %s203 = sphi 0, %s201
      %s204 = sphi 0, %s203
      %s218 = sphi 0, %s204
      %s222 = sphi 0, %s222
      %s224 = sphi 0, %s222
      %s225 = sphi 0, %s224
      %s239 = sphi 0, %s225
      %s243 = sphi 0, %s243
      %s245 = sphi 0, %s243
      %s246 = sphi 0, %s245
      %s260 = sphi 0, %s246
      %s266 = sphi 0, %s268
      %s269 = sphi 0, %s266
      %s270 = sphi 0, %s269
      %s286 = sphi 0, %s270
    $region4: #{tpu_custom_call.1} parent=1 // loop_header_branch
      %23 = sbr.rel (%p21) target = $region8
    $region5: #{tpu_custom_call.1} parent=1 // loop_body
      %s25 = ssub.s32 %s20, 1
      %s26 = ssub.s32 %s20, 2
      %s27 = sadd.s32 %s20, 1
      %s28 = ssub.s32 %s20, %s27
      %p29 = scmp.eq.s32.totalorder %s28, 0
      %s31 = sadd.s32 %s30, 1
      %s32 = scalar_select %p29, %s30, %s31
      %p35 = pneg %p29
      %p36 = scmp.eq.s32.totalorder %s20, 1
      %p37 = por %p35, %p36
      %p38 = scmp.ne.s32.totalorder %s30, %s33
      %p39 = scmp.eq.s32.totalorder %s20, 0
      %p40 = por %p38, %p39
      %p41 = scmp.ne.s32.totalorder %s30, %s33
      %p42 = scmp.eq.s32.totalorder %s25, 1
      %p43 = por %p41, %p42
      %p44 = scmp.ne.s32.totalorder %s33, %s34
      %p45 = scmp.eq.s32.totalorder %s25, 0
      %p46 = por %p44, %p45
      %p47 = scmp.ne.s32.totalorder %s33, %s34
      %p48 = scmp.eq.s32.totalorder %s26, 1
      %p49 = por %p47, %p48
      %p51 = scmp.ne.s32.totalorder %s34, %s50
      %p52 = scmp.eq.s32.totalorder %s26, 0
      %p53 = por %p51, %p52
      %s55 = sadd.s32 %s54, 1
      %p58 = scmp.eq.s32.totalorder %s20, 1
      %p59 = scmp.ne.s32.totalorder %s54, %s56
      %p60 = scmp.eq.s32.totalorder %s20, 0
      %p61 = por %p59, %p60
      %p62 = scmp.ne.s32.totalorder %s54, %s56
      %p63 = scmp.eq.s32.totalorder %s25, 1
      %p64 = por %p62, %p63
      %p65 = scmp.ne.s32.totalorder %s56, %s57
      %p66 = scmp.eq.s32.totalorder %s25, 0
      %p67 = por %p65, %p66
      %p68 = scmp.ne.s32.totalorder %s56, %s57
      %p69 = scmp.eq.s32.totalorder %s26, 1
      %p70 = por %p68, %p69
      %p72 = scmp.ne.s32.totalorder %s57, %s71
      %p73 = scmp.eq.s32.totalorder %s26, 0
      %p74 = por %p72, %p73
      %s76 = sadd.s32 %s75, 1
      %p79 = scmp.eq.s32.totalorder %s20, 1
      %p80 = scmp.ne.s32.totalorder %s75, %s77
      %p81 = scmp.eq.s32.totalorder %s20, 0
      %p82 = por %p80, %p81
      %p83 = scmp.ne.s32.totalorder %s75, %s77
      %p84 = scmp.eq.s32.totalorder %s25, 1
      %p85 = por %p83, %p84
      %p86 = scmp.ne.s32.totalorder %s77, %s78
      %p87 = scmp.eq.s32.totalorder %s25, 0
      %p88 = por %p86, %p87
      %p89 = scmp.ne.s32.totalorder %s77, %s78
      %p90 = scmp.eq.s32.totalorder %s26, 1
      %p91 = por %p89, %p90
      %p93 = scmp.ne.s32.totalorder %s78, %s92
      %p94 = scmp.eq.s32.totalorder %s26, 0
      %p95 = por %p93, %p94
      %s97 = sadd.s32 %s96, 1
      %p100 = scmp.eq.s32.totalorder %s20, 1
      %p101 = scmp.ne.s32.totalorder %s96, %s98
      %p102 = scmp.eq.s32.totalorder %s20, 0
      %p103 = por %p101, %p102
      %p104 = scmp.ne.s32.totalorder %s96, %s98
      %p105 = scmp.eq.s32.totalorder %s25, 1
      %p106 = por %p104, %p105
      %p107 = scmp.ne.s32.totalorder %s98, %s99
      %p108 = scmp.eq.s32.totalorder %s25, 0
      %p109 = por %p107, %p108
      %p110 = scmp.ne.s32.totalorder %s98, %s99
      %p111 = scmp.eq.s32.totalorder %s26, 1
      %p112 = por %p110, %p111
      %p114 = scmp.ne.s32.totalorder %s99, %s113
      %p115 = scmp.eq.s32.totalorder %s26, 0
      %p116 = por %p114, %p115
      %s118 = sadd.s32 %s117, 1
      %p121 = scmp.eq.s32.totalorder %s20, 1
      %p122 = scmp.ne.s32.totalorder %s117, %s119
      %p123 = scmp.eq.s32.totalorder %s20, 0
      %p124 = por %p122, %p123
      %p125 = scmp.ne.s32.totalorder %s117, %s119
      %p126 = scmp.eq.s32.totalorder %s25, 1
      %p127 = por %p125, %p126
      %p128 = scmp.ne.s32.totalorder %s119, %s120
      %p129 = scmp.eq.s32.totalorder %s25, 0
      %p130 = por %p128, %p129
      %p131 = scmp.ne.s32.totalorder %s119, %s120
      %p132 = scmp.eq.s32.totalorder %s26, 1
      %p133 = por %p131, %p132
      %p135 = scmp.ne.s32.totalorder %s120, %s134
      %p136 = scmp.eq.s32.totalorder %s26, 0
      %p137 = por %p135, %p136
      %s139 = sadd.s32 %s138, 1
      %p142 = scmp.eq.s32.totalorder %s20, 1
      %p143 = scmp.ne.s32.totalorder %s138, %s140
      %p144 = scmp.eq.s32.totalorder %s20, 0
      %p145 = por %p143, %p144
      %p146 = scmp.ne.s32.totalorder %s138, %s140
      %p147 = scmp.eq.s32.totalorder %s25, 1
      %p148 = por %p146, %p147
      %p149 = scmp.ne.s32.totalorder %s140, %s141
      %p150 = scmp.eq.s32.totalorder %s25, 0
      %p151 = por %p149, %p150
      %p152 = scmp.ne.s32.totalorder %s140, %s141
      %p153 = scmp.eq.s32.totalorder %s26, 1
      %p154 = por %p152, %p153
      %p156 = scmp.ne.s32.totalorder %s141, %s155
      %p157 = scmp.eq.s32.totalorder %s26, 0
      %p158 = por %p156, %p157
      %s160 = sadd.s32 %s159, 1
      %p163 = scmp.eq.s32.totalorder %s20, 1
      %p164 = scmp.ne.s32.totalorder %s159, %s161
      %p165 = scmp.eq.s32.totalorder %s20, 0
      %p166 = por %p164, %p165
      %p167 = scmp.ne.s32.totalorder %s159, %s161
      %p168 = scmp.eq.s32.totalorder %s25, 1
      %p169 = por %p167, %p168
      %p170 = scmp.ne.s32.totalorder %s161, %s162
      %p171 = scmp.eq.s32.totalorder %s25, 0
      %p172 = por %p170, %p171
      %p173 = scmp.ne.s32.totalorder %s161, %s162
      %p174 = scmp.eq.s32.totalorder %s26, 1
      %p175 = por %p173, %p174
      %p177 = scmp.ne.s32.totalorder %s162, %s176
      %p178 = scmp.eq.s32.totalorder %s26, 0
      %p179 = por %p177, %p178
      %s181 = sadd.s32 %s180, 1
      %p184 = scmp.eq.s32.totalorder %s20, 1
      %p185 = scmp.ne.s32.totalorder %s180, %s182
      %p186 = scmp.eq.s32.totalorder %s20, 0
      %p187 = por %p185, %p186
      %p188 = scmp.ne.s32.totalorder %s180, %s182
      %p189 = scmp.eq.s32.totalorder %s25, 1
      %p190 = por %p188, %p189
      %p191 = scmp.ne.s32.totalorder %s182, %s183
      %p192 = scmp.eq.s32.totalorder %s25, 0
      %p193 = por %p191, %p192
      %p194 = scmp.ne.s32.totalorder %s182, %s183
      %p195 = scmp.eq.s32.totalorder %s26, 1
      %p196 = por %p194, %p195
      %p198 = scmp.ne.s32.totalorder %s183, %s197
      %p199 = scmp.eq.s32.totalorder %s26, 0
      %p200 = por %p198, %p199
      %s202 = sadd.s32 %s201, 1
      %p205 = scmp.eq.s32.totalorder %s20, 1
      %p206 = scmp.ne.s32.totalorder %s201, %s203
      %p207 = scmp.eq.s32.totalorder %s20, 0
      %p208 = por %p206, %p207
      %p209 = scmp.ne.s32.totalorder %s201, %s203
      %p210 = scmp.eq.s32.totalorder %s25, 1
      %p211 = por %p209, %p210
      %p212 = scmp.ne.s32.totalorder %s203, %s204
      %p213 = scmp.eq.s32.totalorder %s25, 0
      %p214 = por %p212, %p213
      %p215 = scmp.ne.s32.totalorder %s203, %s204
      %p216 = scmp.eq.s32.totalorder %s26, 1
      %p217 = por %p215, %p216
      %p219 = scmp.ne.s32.totalorder %s204, %s218
      %p220 = scmp.eq.s32.totalorder %s26, 0
      %p221 = por %p219, %p220
      %s223 = sadd.s32 %s222, 1
      %p226 = scmp.eq.s32.totalorder %s20, 1
      %p227 = scmp.ne.s32.totalorder %s222, %s224
      %p228 = scmp.eq.s32.totalorder %s20, 0
      %p229 = por %p227, %p228
      %p230 = scmp.ne.s32.totalorder %s222, %s224
      %p231 = scmp.eq.s32.totalorder %s25, 1
      %p232 = por %p230, %p231
      %p233 = scmp.ne.s32.totalorder %s224, %s225
      %p234 = scmp.eq.s32.totalorder %s25, 0
      %p235 = por %p233, %p234
      %p236 = scmp.ne.s32.totalorder %s224, %s225
      %p237 = scmp.eq.s32.totalorder %s26, 1
      %p238 = por %p236, %p237
      %p240 = scmp.ne.s32.totalorder %s225, %s239
      %p241 = scmp.eq.s32.totalorder %s26, 0
      %p242 = por %p240, %p241
      %s244 = sadd.s32 %s243, 1
      %p247 = scmp.eq.s32.totalorder %s20, 1
      %p248 = scmp.ne.s32.totalorder %s243, %s245
      %p249 = scmp.eq.s32.totalorder %s20, 0
      %p250 = por %p248, %p249
      %p251 = scmp.ne.s32.totalorder %s243, %s245
      %p252 = scmp.eq.s32.totalorder %s25, 1
      %p253 = por %p251, %p252
      %p254 = scmp.ne.s32.totalorder %s245, %s246
      %p255 = scmp.eq.s32.totalorder %s25, 0
      %p256 = por %p254, %p255
      %p257 = scmp.ne.s32.totalorder %s245, %s246
      %p258 = scmp.eq.s32.totalorder %s26, 1
      %p259 = por %p257, %p258
      %p261 = scmp.ne.s32.totalorder %s246, %s260
      %p262 = scmp.eq.s32.totalorder %s26, 0
      %p263 = por %p261, %p262
      %s264 = ssub.s32 %s20, %s27
      %p265 = scmp.eq.s32.totalorder %s264, 0
      %s267 = sadd.s32 %s266, 1
      %s268 = scalar_select %p265, %s266, %s267
      %p271 = pneg %p265
      %p272 = scmp.eq.s32.totalorder %s20, 1
      %p273 = por %p271, %p272
      %p274 = scmp.ne.s32.totalorder %s266, %s269
      %p275 = scmp.eq.s32.totalorder %s20, 0
      %p276 = por %p274, %p275
      %p277 = scmp.ne.s32.totalorder %s266, %s269
      %p278 = scmp.eq.s32.totalorder %s25, 1
      %p279 = por %p277, %p278
      %p280 = scmp.ne.s32.totalorder %s269, %s270
      %p281 = scmp.eq.s32.totalorder %s25, 0
      %p282 = por %p280, %p281
      %p283 = scmp.ne.s32.totalorder %s269, %s270
      %p284 = scmp.eq.s32.totalorder %s26, 1
      %p285 = por %p283, %p284
      %p287 = scmp.ne.s32.totalorder %s270, %s286
      %p288 = scmp.eq.s32.totalorder %s26, 0
      %p289 = por %p287, %p288
      %p290 = scmp.le.s32.totalorder 1, %s20
      %p291 = scmp.lt.s32.totalorder %s20, 3
      %p292 = pnand %p290, %p291
      %p293 = pneg %p292
      // Predicated region
      $region9: #{tpu_custom_call.1} parent=5 // pred_check
        _
      $region10: #{tpu_custom_call.1} parent=5 // pred_check_branch
        %295 = sbr.rel (%p292) target = $region12
      $region11: #{tpu_custom_call.1} parent=5 // pred_region
        %s296 = ssub.s32 %s20, 1
        // Predicated region
        $region13: #{tpu_custom_call.1} parent=11 // pred_check
          %p297 = pneg %p67
        $region14: #{tpu_custom_call.1} parent=11 // pred_check_branch
          %299 = sbr.rel (%p297) target = $region16
        $region15: #{tpu_custom_call.1} parent=11 // pred_region
          _
        $region16: #{tpu_custom_call.1} parent=11 // pred_fallthru
          _
        // Predicated region
        $region17: #{tpu_custom_call.1} parent=11 // pred_check
          %p300 = pneg %p88
        $region18: #{tpu_custom_call.1} parent=11 // pred_check_branch
          %302 = sbr.rel (%p300) target = $region20
        $region19: #{tpu_custom_call.1} parent=11 // pred_region
          _
        $region20: #{tpu_custom_call.1} parent=11 // pred_fallthru
          _
        // Predicated region
        $region21: #{tpu_custom_call.1} parent=11 // pred_check
          %p303 = pneg %p109
        $region22: #{tpu_custom_call.1} parent=11 // pred_check_branch
          %305 = sbr.rel (%p303) target = $region24
        $region23: #{tpu_custom_call.1} parent=11 // pred_region
          _
        $region24: #{tpu_custom_call.1} parent=11 // pred_fallthru
          _
        // Predicated region
        $region25: #{tpu_custom_call.1} parent=11 // pred_check
          %p306 = pneg %p130
        $region26: #{tpu_custom_call.1} parent=11 // pred_check_branch
          %308 = sbr.rel (%p306) target = $region28
        $region27: #{tpu_custom_call.1} parent=11 // pred_region
          _
        $region28: #{tpu_custom_call.1} parent=11 // pred_fallthru
          _
        // Predicated region
        $region29: #{tpu_custom_call.1} parent=11 // pred_check
          %p309 = pneg %p151
        $region30: #{tpu_custom_call.1} parent=11 // pred_check_branch
          %311 = sbr.rel (%p309) target = $region32
        $region31: #{tpu_custom_call.1} parent=11 // pred_region
          _
        $region32: #{tpu_custom_call.1} parent=11 // pred_fallthru
          _
        // Predicated region
        $region33: #{tpu_custom_call.1} parent=11 // pred_check
          %p312 = pneg %p172
        $region34: #{tpu_custom_call.1} parent=11 // pred_check_branch
          %314 = sbr.rel (%p312) target = $region36
        $region35: #{tpu_custom_call.1} parent=11 // pred_region
          _
        $region36: #{tpu_custom_call.1} parent=11 // pred_fallthru
          _
        // Predicated region
        $region37: #{tpu_custom_call.1} parent=11 // pred_check
          %p315 = pneg %p193
        $region38: #{tpu_custom_call.1} parent=11 // pred_check_branch
          %317 = sbr.rel (%p315) target = $region40
        $region39: #{tpu_custom_call.1} parent=11 // pred_region
          _
        $region40: #{tpu_custom_call.1} parent=11 // pred_fallthru
          _
        // Predicated region
        $region41: #{tpu_custom_call.1} parent=11 // pred_check
          %p318 = pneg %p214
        $region42: #{tpu_custom_call.1} parent=11 // pred_check_branch
          %320 = sbr.rel (%p318) target = $region44
        $region43: #{tpu_custom_call.1} parent=11 // pred_region
          _
        $region44: #{tpu_custom_call.1} parent=11 // pred_fallthru
          _
        // Predicated region
        $region45: #{tpu_custom_call.1} parent=11 // pred_check
          %p321 = pneg %p235
        $region46: #{tpu_custom_call.1} parent=11 // pred_check_branch
          %323 = sbr.rel (%p321) target = $region48
        $region47: #{tpu_custom_call.1} parent=11 // pred_region
          _
        $region48: #{tpu_custom_call.1} parent=11 // pred_fallthru
          _
        // Predicated region
        $region49: #{tpu_custom_call.1} parent=11 // pred_check
          %p324 = pneg %p256
        $region50: #{tpu_custom_call.1} parent=11 // pred_check_branch
          %326 = sbr.rel (%p324) target = $region52
        $region51: #{tpu_custom_call.1} parent=11 // pred_region
          _
        $region52: #{tpu_custom_call.1} parent=11 // pred_fallthru
          _
      $region12: #{tpu_custom_call.1} parent=5 // pred_fallthru
        _
      %p327 = scmp.lt.s32.totalorder %s20, 2
      // Predicated region
      $region53: #{tpu_custom_call.1} parent=5 // pred_check
        %p328 = pneg %p327
      $region54: #{tpu_custom_call.1} parent=5 // pred_check_branch
        %330 = sbr.rel (%p328) target = $region56
      $region55: #{tpu_custom_call.1} parent=5 // pred_region
        // Predicated region
        $region57: #{tpu_custom_call.1} parent=55 // pred_check
          %p331 = pneg %p40
        $region58: #{tpu_custom_call.1} parent=55 // pred_check_branch
          %333 = sbr.rel (%p331) target = $region60
        $region59: #{tpu_custom_call.1} parent=55 // pred_region
          %s334 = smul.u32 16, %s20
          %p335 = scmp.lt.s32.totalorder %s334, 31
          %s336 = scalar_select %p335, %s334, 31
          %s337 = smul.addr %s336, 4
          %s338 = scalar_lea.vmem %s0, %s337
          %s339 = smul.u32 16, %s20
        $region60: #{tpu_custom_call.1} parent=55 // pred_fallthru
          _
      $region56: #{tpu_custom_call.1} parent=5 // pred_fallthru
        _
      %p340 = scmp.le.s32.totalorder 1, %s20
      %p341 = scmp.lt.s32.totalorder %s20, 3
      %p342 = pnand %p340, %p341
      %p343 = pneg %p342
      // Predicated region
      $region61: #{tpu_custom_call.1} parent=5 // pred_check
        _
      $region62: #{tpu_custom_call.1} parent=5 // pred_check_branch
        %345 = sbr.rel (%p342) target = $region64
      $region63: #{tpu_custom_call.1} parent=5 // pred_region
        %s346 = ssub.s32 %s20, 1
        %s347 = smul.u32 16, %s25
        %p348 = scmp.lt.s32.totalorder %s347, 31
        %s349 = scalar_select %p348, %s347, 31
        %s350 = smul.addr %s349, 4
        %s351 = scalar_lea.vmem %s0, %s350
        %p352 = pneg %p46
        %p353 = pneg %p43
        %p354 = pneg %p67
        %p355 = pneg %p64
        %p356 = pneg %p88
        %p357 = pneg %p85
        %p358 = pneg %p109
        %p359 = pneg %p106
        %p360 = pneg %p130
        %p361 = pneg %p127
        %p362 = pneg %p151
        %p363 = pneg %p148
        %p364 = pneg %p172
        %p365 = pneg %p169
        %p366 = pneg %p193
        %p367 = pneg %p190
        %p368 = pneg %p214
        %p369 = pneg %p211
        %p370 = pneg %p235
        %p371 = pneg %p232
        %p372 = pneg %p256
        %p373 = pneg %p253
        %p374 = pneg %p282
        %p375 = pneg %p279
        %s376 = sand.u32 %s269, 1
        %s377 = scalar_lea.sflag [#allocation3], %s376
        %s378 = sand.u32 %s269, 1
        %s379 = smul.addr %s378, 64
        %s380 = scalar_lea.vmem [#allocation2], %s379
        %s381 = smul.u32 16, %s25
        %p382 = scmp.lt.s32.totalorder %s381, 31
        %s383 = scalar_select %p382, %s381, 31
        %s384 = smul.addr %s383, 4
        %s385 = scalar_lea.vmem %s0, %s384
        %s386 = smul.u32 16, %s25
        %s387 = smul.u32 16, %s25
        %v389 = vld [vmem:[%s385] sm:$0xf]
        %v390 = vld [vmem:[%s385 + $0x4] sm:$0xf]
        %v391 = vld [vmem:[%s385 + $0x8] sm:$0xf]
        %v392 = vld [vmem:[%s385 + $0xc] sm:$0xf]
        %v393 = vld [vmem:[%s385 + $0x10] sm:$0xf]
        %v394 = vld [vmem:[%s385 + $0x14] sm:$0xf]
        %v395 = vld [vmem:[%s385 + $0x18] sm:$0xf]
        %v396 = vld [vmem:[%s385 + $0x1c] sm:$0xf]
        %v397 = vld [vmem:[%s385 + $0x20] sm:$0xf]
        %v398 = vld [vmem:[%s385 + $0x24] sm:$0xf]
        %v399 = vld [vmem:[%s385 + $0x28] sm:$0xf]
        %v400 = vld [vmem:[%s385 + $0x2c] sm:$0xf]
        %v401 = vld [vmem:[%s385 + $0x30] sm:$0xf]
        %v402 = vld [vmem:[%s385 + $0x34] sm:$0xf]
        %v403 = vld [vmem:[%s385 + $0x38] sm:$0xf]
        %v404 = vld [vmem:[%s385 + $0x3c] sm:$0xf]
        %v405 = vld [vmem:[%s1] sm:$0xff]
        %v406 = vld [vmem:[%s2] sm:$0x3]
        %v408 = vlaneseq
        %v409 = vshrl.u32 %v408, 7
        %v410 = vsub.s32 0, %v409
        %v411 = vrot.slane %v406, %v410
        %v412 = vlaneseq
        %v413 = vshrl.u32 %v412, 7
        %v414 = vsub.s32 1, %v413
        %v415 = vrot.slane %v406, %v414
        %v434 = vunpack.c.l.b16 %v389
        %v435 = vunpack.c.l.b16 %v390
        %v436 = vunpack.c.l.b16 %v391
        %v437 = vunpack.c.l.b16 %v392
        %v438 = vunpack.c.l.b16 %v393
        %v439 = vunpack.c.l.b16 %v394
        %v440 = vunpack.c.l.b16 %v395
        %v441 = vunpack.c.l.b16 %v396
        %v442 = vunpack.c.l.b16 %v397
        %v443 = vunpack.c.l.b16 %v398
        %v444 = vunpack.c.l.b16 %v399
        %v445 = vunpack.c.l.b16 %v400
        %v446 = vunpack.c.l.b16 %v401
        %v447 = vunpack.c.l.b16 %v402
        %v448 = vunpack.c.l.b16 %v403
        %v449 = vunpack.c.l.b16 %v404
        %v450 = vpack.c.b16 %v435, %v434
        %v451 = vpack.c.b16 %v437, %v436
        %v452 = vpack.c.b16 %v439, %v438
        %v453 = vpack.c.b16 %v441, %v440
        %v454 = vpack.c.b16 %v443, %v442
        %v455 = vpack.c.b16 %v445, %v444
        %v456 = vpack.c.b16 %v447, %v446
        %v457 = vpack.c.b16 %v449, %v448
        %v459 = vunpack.c.l.b16 %v405
        %v460 = vunpack.c.h.b16 %v405
        %v461 = vpack.c.b16 %v459, %v459
        %v462 = vpack.c.b16 %v460, %v460
        %vm463 = vcmask 64512
        %v465 = vsel %vm463, %v450, 0
        %v468 = vsel %vm463, %v451, 0
        %v471 = vsel %vm463, %v452, 0
        %v474 = vsel %vm463, %v453, 0
        %v477 = vsel %vm463, %v454, 0
        %v480 = vsel %vm463, %v455, 0
        %v483 = vsel %vm463, %v456, 0
        %v486 = vsel %vm463, %v457, 0
        %vm488 = vcmask 1043456
        %v490 = vsel %vm488, %v461, 0
        %v493 = vsel %vm488, %v462, 0
        %495 = vmatprep.subr.bf16.mxu0 %v493
        %496 = vmatpush1.bf16.msra.mxu0 %v490
        %497 = vmatprep.subr.bf16.mxu0 0
        %498 = vmatpush1.bf16.msra.mxu0 0
        %499 = vmatprep.subr.bf16.mxu0 0
        %500 = vmatpush1.bf16.msra.mxu0 0
        %501 = vmatprep.subr.bf16.mxu0 0
        %502 = vmatpush1.bf16.msra.mxu0 0
        %503 = vmatprep.subr.bf16.mxu0 0
        %504 = vmatpush1.bf16.msra.mxu0 0
        %505 = vmatprep.subr.bf16.mxu0 0
        %506 = vmatpush1.bf16.msra.mxu0 0
        %507 = vmatprep.subr.bf16.mxu0 0
        %508 = vmatpush1.bf16.msra.mxu0 0
        %509 = vmatprep.subr.bf16.mxu0 0
        %510 = vmatpush1.bf16.msra.mxu0 0
        %511 = vmatprep.subr.bf16.mxu0 0
        %512 = vmatpush1.bf16.msra.mxu0 0
        %513 = vmatprep.subr.bf16.mxu0 0
        %514 = vmatpush1.bf16.msra.mxu0 0
        %515 = vmatprep.subr.bf16.mxu0 0
        %516 = vmatpush1.bf16.msra.mxu0 0
        %517 = vmatprep.subr.bf16.mxu0 0
        %518 = vmatpush1.bf16.msra.mxu0 0
        %519 = vmatprep.subr.bf16.mxu0 0
        %520 = vmatpush1.bf16.msra.mxu0 0
        %521 = vmatprep.subr.bf16.mxu0 0
        %522 = vmatpush1.bf16.msra.mxu0 0
        %523 = vmatprep.subr.bf16.mxu0 0
        %524 = vmatpush1.bf16.msra.mxu0 0
        %525 = vmatprep.subr.bf16.mxu0 0
        %526 = vmatpush1.bf16.msra.mxu0 0
        %527 = vmatprep.mubr.bf16.mxu0 0
        %528 = vmatmul.mubr.bf16.gmra.mrb[0].mxu0 %v465
        %v529 = vpop.f32.mrb[0].mxu0
        %v530 = vadd.f32 %v411, %v529
        %v531 = vpop.f32.mrb[0].mxu0
        %v532 = vadd.f32 %v415, %v531
        %v533 = vpop.f32.mrb[0].mxu0
        %v534 = vadd.f32 %v411, %v533
        %v535 = vpop.f32.mrb[0].mxu0
        %v536 = vadd.f32 %v415, %v535
        %537 = vmatprep.mubr.bf16.mxu0 0
        %538 = vmatmul.mubr.bf16.gmra.mrb[0].mxu0 %v468
        %v539 = vpop.f32.mrb[0].mxu0
        %v540 = vadd.f32 %v411, %v539
        %v541 = vpop.f32.mrb[0].mxu0
        %v542 = vadd.f32 %v415, %v541
        %v543 = vpop.f32.mrb[0].mxu0
        %v544 = vadd.f32 %v411, %v543
        %v545 = vpop.f32.mrb[0].mxu0
        %v546 = vadd.f32 %v415, %v545
        %547 = vmatprep.mubr.bf16.mxu0 0
        %548 = vmatmul.mubr.bf16.gmra.mrb[0].mxu0 %v471
        %v549 = vpop.f32.mrb[0].mxu0
        %v550 = vadd.f32 %v411, %v549
        %v551 = vpop.f32.mrb[0].mxu0
        %v552 = vadd.f32 %v415, %v551
        %v553 = vpop.f32.mrb[0].mxu0
        %v554 = vadd.f32 %v411, %v553
        %v555 = vpop.f32.mrb[0].mxu0
        %v556 = vadd.f32 %v415, %v555
        %557 = vmatprep.mubr.bf16.mxu0 0
        %558 = vmatmul.mubr.bf16.gmra.mrb[0].mxu0 %v474
        %v559 = vpop.f32.mrb[0].mxu0
        %v560 = vadd.f32 %v411, %v559
        %v561 = vpop.f32.mrb[0].mxu0
        %v562 = vadd.f32 %v415, %v561
        %v563 = vpop.f32.mrb[0].mxu0
        %v564 = vadd.f32 %v411, %v563
        %v565 = vpop.f32.mrb[0].mxu0
        %v566 = vadd.f32 %v415, %v565
        %567 = vmatprep.mubr.bf16.mxu0 0
        %568 = vmatmul.mubr.bf16.gmra.mrb[0].mxu0 %v477
        %v569 = vpop.f32.mrb[0].mxu0
        %v570 = vadd.f32 %v411, %v569
        %v571 = vpop.f32.mrb[0].mxu0
        %v572 = vadd.f32 %v415, %v571
        %v573 = vpop.f32.mrb[0].mxu0
        %v574 = vadd.f32 %v411, %v573
        %v575 = vpop.f32.mrb[0].mxu0
        %v576 = vadd.f32 %v415, %v575
        %577 = vmatprep.mubr.bf16.mxu0 0
        %578 = vmatmul.mubr.bf16.gmra.mrb[0].mxu0 %v480
        %v579 = vpop.f32.mrb[0].mxu0
        %v580 = vadd.f32 %v411, %v579
        %v581 = vpop.f32.mrb[0].mxu0
        %v582 = vadd.f32 %v415, %v581
        %v583 = vpop.f32.mrb[0].mxu0
        %v584 = vadd.f32 %v411, %v583
        %v585 = vpop.f32.mrb[0].mxu0
        %v586 = vadd.f32 %v415, %v585
        %587 = vmatprep.mubr.bf16.mxu0 0
        %588 = vmatmul.mubr.bf16.gmra.mrb[0].mxu0 %v483
        %v589 = vpop.f32.mrb[0].mxu0
        %v590 = vadd.f32 %v411, %v589
        %v591 = vpop.f32.mrb[0].mxu0
        %v592 = vadd.f32 %v415, %v591
        %v593 = vpop.f32.mrb[0].mxu0
        %v594 = vadd.f32 %v411, %v593
        %v595 = vpop.f32.mrb[0].mxu0
        %v596 = vadd.f32 %v415, %v595
        %597 = vmatprep.mubr.bf16.mxu0 0
        %598 = vmatmul.mubr.bf16.gmra.mrb[0].mxu0 %v486
        %v599 = vpop.f32.mrb[0].mxu0
        %v600 = vadd.f32 %v411, %v599
        %v601 = vpop.f32.mrb[0].mxu0
        %v602 = vadd.f32 %v415, %v601
        %v603 = vpop.f32.mrb[0].mxu0
        %v604 = vadd.f32 %v411, %v603
        %v605 = vpop.f32.mrb[0].mxu0
        %v606 = vadd.f32 %v415, %v605
        %607 = vdwg.mxu0
        %v608 = vmax.f32 %v530, 0.0
        %v609 = vmax.f32 %v532, 0.0
        %v610 = vmax.f32 %v534, 0.0
        %v611 = vmax.f32 %v536, 0.0
        %v612 = vmax.f32 %v540, 0.0
        %v613 = vmax.f32 %v542, 0.0
        %v614 = vmax.f32 %v544, 0.0
        %v615 = vmax.f32 %v546, 0.0
        %v616 = vmax.f32 %v550, 0.0
        %v617 = vmax.f32 %v552, 0.0
        %v618 = vmax.f32 %v554, 0.0
        %v619 = vmax.f32 %v556, 0.0
        %v620 = vmax.f32 %v560, 0.0
        %v621 = vmax.f32 %v562, 0.0
        %v622 = vmax.f32 %v564, 0.0
        %v623 = vmax.f32 %v566, 0.0
        %v624 = vmax.f32 %v570, 0.0
        %v625 = vmax.f32 %v572, 0.0
        %v626 = vmax.f32 %v574, 0.0
        %v627 = vmax.f32 %v576, 0.0
        %v628 = vmax.f32 %v580, 0.0
        %v629 = vmax.f32 %v582, 0.0
        %v630 = vmax.f32 %v584, 0.0
        %v631 = vmax.f32 %v586, 0.0
        %v632 = vmax.f32 %v590, 0.0
        %v633 = vmax.f32 %v592, 0.0
        %v634 = vmax.f32 %v594, 0.0
        %v635 = vmax.f32 %v596, 0.0
        %v636 = vmax.f32 %v600, 0.0
        %v637 = vmax.f32 %v602, 0.0
        %v638 = vmax.f32 %v604, 0.0
        %v639 = vmax.f32 %v606, 0.0
        %v640 = vpack.c.bf16 %v610, %v608
        %v641 = vpack.c.bf16 %v611, %v609
        %v642 = vpack.c.bf16 %v614, %v612
        %v643 = vpack.c.bf16 %v615, %v613
        %v644 = vpack.c.bf16 %v618, %v616
        %v645 = vpack.c.bf16 %v619, %v617
        %v646 = vpack.c.bf16 %v622, %v620
        %v647 = vpack.c.bf16 %v623, %v621
        %v648 = vpack.c.bf16 %v626, %v624
        %v649 = vpack.c.bf16 %v627, %v625
        %v650 = vpack.c.bf16 %v630, %v628
        %v651 = vpack.c.bf16 %v631, %v629
        %v652 = vpack.c.bf16 %v634, %v632
        %v653 = vpack.c.bf16 %v635, %v633
        %v654 = vpack.c.bf16 %v638, %v636
        %v655 = vpack.c.bf16 %v639, %v637
        %v656 = vld [vmem:[%s3] sm:$0xf]
        %v657 = vld [vmem:[%s3 + $0x4] sm:$0xf]
        %v658 = vld [vmem:[%s3 + $0x8] sm:$0xf]
        %v659 = vld [vmem:[%s3 + $0xc] sm:$0xf]
        %v660 = vld [vmem:[%s3 + $0x10] sm:$0xf]
        %v661 = vld [vmem:[%s3 + $0x14] sm:$0xf]
        %v662 = vld [vmem:[%s3 + $0x18] sm:$0xf]
        %v663 = vld [vmem:[%s3 + $0x1c] sm:$0xf]
        %v664 = vld [vmem:[%s3 + $0x20] sm:$0xf]
        %v665 = vld [vmem:[%s3 + $0x24] sm:$0xf]
        %v666 = vld [vmem:[%s3 + $0x28] sm:$0xf]
        %v667 = vld [vmem:[%s3 + $0x2c] sm:$0xf]
        %v668 = vld [vmem:[%s3 + $0x30] sm:$0xf]
        %v669 = vld [vmem:[%s3 + $0x34] sm:$0xf]
        %v670 = vld [vmem:[%s3 + $0x38] sm:$0xf]
        %v671 = vld [vmem:[%s3 + $0x3c] sm:$0xf]
        %v672 = vld [vmem:[%s3 + $0x40] sm:$0xf]
        %v673 = vld [vmem:[%s3 + $0x44] sm:$0xf]
        %v674 = vld [vmem:[%s3 + $0x48] sm:$0xf]
        %v675 = vld [vmem:[%s3 + $0x4c] sm:$0xf]
        %v676 = vld [vmem:[%s3 + $0x50] sm:$0xf]
        %v677 = vld [vmem:[%s3 + $0x54] sm:$0xf]
        %v678 = vld [vmem:[%s3 + $0x58] sm:$0xf]
        %v679 = vld [vmem:[%s3 + $0x5c] sm:$0xf]
        %v680 = vld [vmem:[%s3 + $0x60] sm:$0xf]
        %v681 = vld [vmem:[%s3 + $0x64] sm:$0xf]
        %v682 = vld [vmem:[%s3 + $0x68] sm:$0xf]
        %v683 = vld [vmem:[%s3 + $0x6c] sm:$0xf]
        %v684 = vld [vmem:[%s3 + $0x70] sm:$0xf]
        %v685 = vld [vmem:[%s3 + $0x74] sm:$0xf]
        %v686 = vld [vmem:[%s3 + $0x78] sm:$0xf]
        %v687 = vld [vmem:[%s3 + $0x7c] sm:$0xf]
        %v688 = vld [vmem:[%s4] sm:$0x1]
        %v690 = vlaneseq
        %v691 = vshrl.u32 %v690, 7
        %v692 = vsub.s32 0, %v691
        %v693 = vrot.slane %v688, %v692
        %v727 = vunpack.c.l.b16 %v656
        %v728 = vunpack.c.l.b16 %v657
        %v729 = vunpack.c.l.b16 %v658
        %v730 = vunpack.c.l.b16 %v659
        %v731 = vunpack.c.l.b16 %v660
        %v732 = vunpack.c.l.b16 %v661
        %v733 = vunpack.c.l.b16 %v662
        %v734 = vunpack.c.l.b16 %v663
        %v735 = vunpack.c.l.b16 %v664
        %v736 = vunpack.c.l.b16 %v665
        %v737 = vunpack.c.l.b16 %v666
        %v738 = vunpack.c.l.b16 %v667
        %v739 = vunpack.c.l.b16 %v668
        %v740 = vunpack.c.l.b16 %v669
        %v741 = vunpack.c.l.b16 %v670
        %v742 = vunpack.c.l.b16 %v671
        %v743 = vunpack.c.l.b16 %v672
        %v744 = vunpack.c.l.b16 %v673
        %v745 = vunpack.c.l.b16 %v674
        %v746 = vunpack.c.l.b16 %v675
        %v747 = vunpack.c.l.b16 %v676
        %v748 = vunpack.c.l.b16 %v677
        %v749 = vunpack.c.l.b16 %v678
        %v750 = vunpack.c.l.b16 %v679
        %v751 = vunpack.c.l.b16 %v680
        %v752 = vunpack.c.l.b16 %v681
        %v753 = vunpack.c.l.b16 %v682
        %v754 = vunpack.c.l.b16 %v683
        %v755 = vunpack.c.l.b16 %v684
        %v756 = vunpack.c.l.b16 %v685
        %v757 = vunpack.c.l.b16 %v686
        %v758 = vunpack.c.l.b16 %v687
        %v759 = vpack.c.b16 %v728, %v727
        %v760 = vpack.c.b16 %v730, %v729
        %v761 = vpack.c.b16 %v732, %v731
        %v762 = vpack.c.b16 %v734, %v733
        %v763 = vpack.c.b16 %v736, %v735
        %v764 = vpack.c.b16 %v738, %v737
        %v765 = vpack.c.b16 %v740, %v739
        %v766 = vpack.c.b16 %v742, %v741
        %v767 = vpack.c.b16 %v744, %v743
        %v768 = vpack.c.b16 %v746, %v745
        %v769 = vpack.c.b16 %v748, %v747
        %v770 = vpack.c.b16 %v750, %v749
        %v771 = vpack.c.b16 %v752, %v751
        %v772 = vpack.c.b16 %v754, %v753
        %v773 = vpack.c.b16 %v756, %v755
        %v774 = vpack.c.b16 %v758, %v757
        %791 = vmatprep.subr.bf16.mxu0 0
        %792 = vmatpush1.bf16.msra.mxu0 %v759
        %793 = vmatprep.subr.bf16.mxu0 0
        %794 = vmatpush1.bf16.msra.mxu0 %v760
        %795 = vmatprep.subr.bf16.mxu0 0
        %796 = vmatpush1.bf16.msra.mxu0 %v761
        %797 = vmatprep.subr.bf16.mxu0 0
        %798 = vmatpush1.bf16.msra.mxu0 %v762
        %799 = vmatprep.subr.bf16.mxu0 0
        %800 = vmatpush1.bf16.msra.mxu0 %v763
        %801 = vmatprep.subr.bf16.mxu0 0
        %802 = vmatpush1.bf16.msra.mxu0 %v764
        %803 = vmatprep.subr.bf16.mxu0 0
        %804 = vmatpush1.bf16.msra.mxu0 %v765
        %805 = vmatprep.subr.bf16.mxu0 0
        %806 = vmatpush1.bf16.msra.mxu0 %v766
        %807 = vmatprep.subr.bf16.mxu0 0
        %808 = vmatpush1.bf16.msra.mxu0 %v767
        %809 = vmatprep.subr.bf16.mxu0 0
        %810 = vmatpush1.bf16.msra.mxu0 %v768
        %811 = vmatprep.subr.bf16.mxu0 0
        %812 = vmatpush1.bf16.msra.mxu0 %v769
        %813 = vmatprep.subr.bf16.mxu0 0
        %814 = vmatpush1.bf16.msra.mxu0 %v770
        %815 = vmatprep.subr.bf16.mxu0 0
        %816 = vmatpush1.bf16.msra.mxu0 %v771
        %817 = vmatprep.subr.bf16.mxu0 0
        %818 = vmatpush1.bf16.msra.mxu0 %v772
        %819 = vmatprep.subr.bf16.mxu0 0
        %820 = vmatpush1.bf16.msra.mxu0 %v773
        %821 = vmatprep.subr.bf16.mxu0 0
        %822 = vmatpush1.bf16.msra.mxu0 %v774
        %823 = vmatprep.mubr.bf16.mxu0 %v641
        %824 = vmatmul.mubr.bf16.gmra.mrb[0].mxu0 %v640
        %v825 = vpop.f32.mrb[0].mxu0
        %v826 = vadd.f32 %v693, %v825
        %v827 = vpop.f32.mrb[0].mxu0
        %v828 = vpop.f32.mrb[0].mxu0
        %v829 = vadd.f32 %v693, %v828
        %v830 = vpop.f32.mrb[0].mxu0
        %831 = vmatprep.mubr.bf16.mxu0 %v643
        %832 = vmatmul.mubr.bf16.gmra.mrb[0].mxu0 %v642
        %v833 = vpop.f32.mrb[0].mxu0
        %v834 = vadd.f32 %v693, %v833
        %v835 = vpop.f32.mrb[0].mxu0
        %v836 = vpop.f32.mrb[0].mxu0
        %v837 = vadd.f32 %v693, %v836
        %v838 = vpop.f32.mrb[0].mxu0
        %839 = vmatprep.mubr.bf16.mxu0 %v645
        %840 = vmatmul.mubr.bf16.gmra.mrb[0].mxu0 %v644
        %v841 = vpop.f32.mrb[0].mxu0
        %v842 = vadd.f32 %v693, %v841
        %v843 = vpop.f32.mrb[0].mxu0
        %v844 = vpop.f32.mrb[0].mxu0
        %v845 = vadd.f32 %v693, %v844
        %v846 = vpop.f32.mrb[0].mxu0
        %847 = vmatprep.mubr.bf16.mxu0 %v647
        %848 = vmatmul.mubr.bf16.gmra.mrb[0].mxu0 %v646
        %v849 = vpop.f32.mrb[0].mxu0
        %v850 = vadd.f32 %v693, %v849
        %v851 = vpop.f32.mrb[0].mxu0
        %v852 = vpop.f32.mrb[0].mxu0
        %v853 = vadd.f32 %v693, %v852
        %v854 = vpop.f32.mrb[0].mxu0
        %855 = vmatprep.mubr.bf16.mxu0 %v649
        %856 = vmatmul.mubr.bf16.gmra.mrb[0].mxu0 %v648
        %v857 = vpop.f32.mrb[0].mxu0
        %v858 = vadd.f32 %v693, %v857
        %v859 = vpop.f32.mrb[0].mxu0
        %v860 = vpop.f32.mrb[0].mxu0
        %v861 = vadd.f32 %v693, %v860
        %v862 = vpop.f32.mrb[0].mxu0
        %863 = vmatprep.mubr.bf16.mxu0 %v651
        %864 = vmatmul.mubr.bf16.gmra.mrb[0].mxu0 %v650
        %v865 = vpop.f32.mrb[0].mxu0
        %v866 = vadd.f32 %v693, %v865
        %v867 = vpop.f32.mrb[0].mxu0
        %v868 = vpop.f32.mrb[0].mxu0
        %v869 = vadd.f32 %v693, %v868
        %v870 = vpop.f32.mrb[0].mxu0
        %871 = vmatprep.mubr.bf16.mxu0 %v653
        %872 = vmatmul.mubr.bf16.gmra.mrb[0].mxu0 %v652
        %v873 = vpop.f32.mrb[0].mxu0
        %v874 = vadd.f32 %v693, %v873
        %v875 = vpop.f32.mrb[0].mxu0
        %v876 = vpop.f32.mrb[0].mxu0
        %v877 = vadd.f32 %v693, %v876
        %v878 = vpop.f32.mrb[0].mxu0
        %879 = vmatprep.mubr.bf16.mxu0 %v655
        %880 = vmatmul.mubr.bf16.gmra.mrb[0].mxu0 %v654
        %v881 = vpop.f32.mrb[0].mxu0
        %v882 = vadd.f32 %v693, %v881
        %v883 = vpop.f32.mrb[0].mxu0
        %v884 = vpop.f32.mrb[0].mxu0
        %v885 = vadd.f32 %v693, %v884
        %v886 = vpop.f32.mrb[0].mxu0
        %887 = vdwg.mxu0
        %v888 = vmax.f32 %v826, 0.0
        %v889 = vmax.f32 %v829, 0.0
        %v890 = vmax.f32 %v834, 0.0
        %v891 = vmax.f32 %v837, 0.0
        %v892 = vmax.f32 %v842, 0.0
        %v893 = vmax.f32 %v845, 0.0
        %v894 = vmax.f32 %v850, 0.0
        %v895 = vmax.f32 %v853, 0.0
        %v896 = vmax.f32 %v858, 0.0
        %v897 = vmax.f32 %v861, 0.0
        %v898 = vmax.f32 %v866, 0.0
        %v899 = vmax.f32 %v869, 0.0
        %v900 = vmax.f32 %v874, 0.0
        %v901 = vmax.f32 %v877, 0.0
        %v902 = vmax.f32 %v882, 0.0
        %v903 = vmax.f32 %v885, 0.0
        %v904 = vpack.c.bf16 %v889, %v888
        %v905 = vpack.c.bf16 %v891, %v890
        %v906 = vpack.c.bf16 %v893, %v892
        %v907 = vpack.c.bf16 %v895, %v894
        %v908 = vpack.c.bf16 %v897, %v896
        %v909 = vpack.c.bf16 %v899, %v898
        %v910 = vpack.c.bf16 %v901, %v900
        %v911 = vpack.c.bf16 %v903, %v902
        %v912 = vld [vmem:[%s5] sm:$0xf]
        %v913 = vld [vmem:[%s5 + $0x4] sm:$0xf]
        %v914 = vld [vmem:[%s5 + $0x8] sm:$0xf]
        %v915 = vld [vmem:[%s5 + $0xc] sm:$0xf]
        %v916 = vld [vmem:[%s5 + $0x10] sm:$0xf]
        %v917 = vld [vmem:[%s5 + $0x14] sm:$0xf]
        %v918 = vld [vmem:[%s5 + $0x18] sm:$0xf]
        %v919 = vld [vmem:[%s5 + $0x1c] sm:$0xf]
        %v920 = vld [vmem:[%s5 + $0x20] sm:$0xf]
        %v921 = vld [vmem:[%s5 + $0x24] sm:$0xf]
        %v922 = vld [vmem:[%s5 + $0x28] sm:$0xf]
        %v923 = vld [vmem:[%s5 + $0x2c] sm:$0xf]
        %v924 = vld [vmem:[%s5 + $0x30] sm:$0xf]
        %v925 = vld [vmem:[%s5 + $0x34] sm:$0xf]
        %v926 = vld [vmem:[%s5 + $0x38] sm:$0xf]
        %v927 = vld [vmem:[%s5 + $0x3c] sm:$0xf]
        %v928 = vld [vmem:[%s6] sm:$0x1]
        %v930 = vlaneseq
        %v931 = vshrl.u32 %v930, 7
        %v932 = vsub.s32 0, %v931
        %v933 = vrot.slane %v928, %v932
        %v951 = vunpack.c.l.b16 %v912
        %v952 = vunpack.c.l.b16 %v913
        %v953 = vunpack.c.l.b16 %v914
        %v954 = vunpack.c.l.b16 %v915
        %v955 = vunpack.c.l.b16 %v916
        %v956 = vunpack.c.l.b16 %v917
        %v957 = vunpack.c.l.b16 %v918
        %v958 = vunpack.c.l.b16 %v919
        %v959 = vunpack.c.l.b16 %v920
        %v960 = vunpack.c.l.b16 %v921
        %v961 = vunpack.c.l.b16 %v922
        %v962 = vunpack.c.l.b16 %v923
        %v963 = vunpack.c.l.b16 %v924
        %v964 = vunpack.c.l.b16 %v925
        %v965 = vunpack.c.l.b16 %v926
        %v966 = vunpack.c.l.b16 %v927
        %v967 = vpack.c.b16 %v952, %v951
        %v968 = vpack.c.b16 %v954, %v953
        %v969 = vpack.c.b16 %v956, %v955
        %v970 = vpack.c.b16 %v958, %v957
        %v971 = vpack.c.b16 %v960, %v959
        %v972 = vpack.c.b16 %v962, %v961
        %v973 = vpack.c.b16 %v964, %v963
        %v974 = vpack.c.b16 %v966, %v965
        %983 = vmatprep.subr.bf16.mxu0 0
        %984 = vmatpush1.bf16.msra.mxu0 %v967
        %985 = vmatprep.subr.bf16.mxu0 0
        %986 = vmatpush1.bf16.msra.mxu0 %v968
        %987 = vmatprep.subr.bf16.mxu0 0
        %988 = vmatpush1.bf16.msra.mxu0 %v969
        %989 = vmatprep.subr.bf16.mxu0 0
        %990 = vmatpush1.bf16.msra.mxu0 %v970
        %991 = vmatprep.subr.bf16.mxu0 0
        %992 = vmatpush1.bf16.msra.mxu0 %v971
        %993 = vmatprep.subr.bf16.mxu0 0
        %994 = vmatpush1.bf16.msra.mxu0 %v972
        %995 = vmatprep.subr.bf16.mxu0 0
        %996 = vmatpush1.bf16.msra.mxu0 %v973
        %997 = vmatprep.subr.bf16.mxu0 0
        %998 = vmatpush1.bf16.msra.mxu0 %v974
        %999 = vmatprep.subr.bf16.mxu0 0
        %1000 = vmatpush1.bf16.msra.mxu0 0
        %1001 = vmatprep.subr.bf16.mxu0 0
        %1002 = vmatpush1.bf16.msra.mxu0 0
        %1003 = vmatprep.subr.bf16.mxu0 0
        %1004 = vmatpush1.bf16.msra.mxu0 0
        %1005 = vmatprep.subr.bf16.mxu0 0
        %1006 = vmatpush1.bf16.msra.mxu0 0
        %1007 = vmatprep.subr.bf16.mxu0 0
        %1008 = vmatpush1.bf16.msra.mxu0 0
        %1009 = vmatprep.subr.bf16.mxu0 0
        %1010 = vmatpush1.bf16.msra.mxu0 0
        %1011 = vmatprep.subr.bf16.mxu0 0
        %1012 = vmatpush1.bf16.msra.mxu0 0
        %1013 = vmatprep.subr.bf16.mxu0 0
        %1014 = vmatpush1.bf16.msra.mxu0 0
        %1015 = vmatprep.mubr.bf16.mxu0 0
        %1016 = vmatmul.mubr.bf16.gmra.mrb[0].mxu0 %v904
        %v1017 = vpop.f32.mrb[0].mxu0
        %v1018 = vadd.f32 %v933, %v1017
        %v1019 = vpop.f32.mrb[0].mxu0
        %v1020 = vpop.f32.mrb[0].mxu0
        %v1021 = vadd.f32 %v933, %v1020
        %v1022 = vpop.f32.mrb[0].mxu0
        %1023 = vmatprep.mubr.bf16.mxu0 0
        %1024 = vmatmul.mubr.bf16.gmra.mrb[0].mxu0 %v905
        %v1025 = vpop.f32.mrb[0].mxu0
        %v1026 = vadd.f32 %v933, %v1025
        %v1027 = vpop.f32.mrb[0].mxu0
        %v1028 = vpop.f32.mrb[0].mxu0
        %v1029 = vadd.f32 %v933, %v1028
        %v1030 = vpop.f32.mrb[0].mxu0
        %1031 = vmatprep.mubr.bf16.mxu0 0
        %1032 = vmatmul.mubr.bf16.gmra.mrb[0].mxu0 %v906
        %v1033 = vpop.f32.mrb[0].mxu0
        %v1034 = vadd.f32 %v933, %v1033
        %v1035 = vpop.f32.mrb[0].mxu0
        %v1036 = vpop.f32.mrb[0].mxu0
        %v1037 = vadd.f32 %v933, %v1036
        %v1038 = vpop.f32.mrb[0].mxu0
        %1039 = vmatprep.mubr.bf16.mxu0 0
        %1040 = vmatmul.mubr.bf16.gmra.mrb[0].mxu0 %v907
        %v1041 = vpop.f32.mrb[0].mxu0
        %v1042 = vadd.f32 %v933, %v1041
        %v1043 = vpop.f32.mrb[0].mxu0
        %v1044 = vpop.f32.mrb[0].mxu0
        %v1045 = vadd.f32 %v933, %v1044
        %v1046 = vpop.f32.mrb[0].mxu0
        %1047 = vmatprep.mubr.bf16.mxu0 0
        %1048 = vmatmul.mubr.bf16.gmra.mrb[0].mxu0 %v908
        %v1049 = vpop.f32.mrb[0].mxu0
        %v1050 = vadd.f32 %v933, %v1049
        %v1051 = vpop.f32.mrb[0].mxu0
        %v1052 = vpop.f32.mrb[0].mxu0
        %v1053 = vadd.f32 %v933, %v1052
        %v1054 = vpop.f32.mrb[0].mxu0
        %1055 = vmatprep.mubr.bf16.mxu0 0
        %1056 = vmatmul.mubr.bf16.gmra.mrb[0].mxu0 %v909
        %v1057 = vpop.f32.mrb[0].mxu0
        %v1058 = vadd.f32 %v933, %v1057
        %v1059 = vpop.f32.mrb[0].mxu0
        %v1060 = vpop.f32.mrb[0].mxu0
        %v1061 = vadd.f32 %v933, %v1060
        %v1062 = vpop.f32.mrb[0].mxu0
        %1063 = vmatprep.mubr.bf16.mxu0 0
        %1064 = vmatmul.mubr.bf16.gmra.mrb[0].mxu0 %v910
        %v1065 = vpop.f32.mrb[0].mxu0
        %v1066 = vadd.f32 %v933, %v1065
        %v1067 = vpop.f32.mrb[0].mxu0
        %v1068 = vpop.f32.mrb[0].mxu0
        %v1069 = vadd.f32 %v933, %v1068
        %v1070 = vpop.f32.mrb[0].mxu0
        %1071 = vmatprep.mubr.bf16.mxu0 0
        %1072 = vmatmul.mubr.bf16.gmra.mrb[0].mxu0 %v911
        %v1073 = vpop.f32.mrb[0].mxu0
        %v1074 = vadd.f32 %v933, %v1073
        %v1075 = vpop.f32.mrb[0].mxu0
        %v1076 = vpop.f32.mrb[0].mxu0
        %v1077 = vadd.f32 %v933, %v1076
        %v1078 = vpop.f32.mrb[0].mxu0
        %1079 = vdwg.mxu0
        %v1080 = vmax.f32 %v1018, 0.0
        %v1081 = vmax.f32 %v1021, 0.0
        %v1082 = vmax.f32 %v1026, 0.0
        %v1083 = vmax.f32 %v1029, 0.0
        %v1084 = vmax.f32 %v1034, 0.0
        %v1085 = vmax.f32 %v1037, 0.0
        %v1086 = vmax.f32 %v1042, 0.0
        %v1087 = vmax.f32 %v1045, 0.0
        %v1088 = vmax.f32 %v1050, 0.0
        %v1089 = vmax.f32 %v1053, 0.0
        %v1090 = vmax.f32 %v1058, 0.0
        %v1091 = vmax.f32 %v1061, 0.0
        %v1092 = vmax.f32 %v1066, 0.0
        %v1093 = vmax.f32 %v1069, 0.0
        %v1094 = vmax.f32 %v1074, 0.0
        %v1095 = vmax.f32 %v1077, 0.0
        %v1096 = vpack.c.bf16 %v1081, %v1080
        %v1097 = vpack.c.bf16 %v1083, %v1082
        %v1098 = vpack.c.bf16 %v1085, %v1084
        %v1099 = vpack.c.bf16 %v1087, %v1086
        %v1100 = vpack.c.bf16 %v1089, %v1088
        %v1101 = vpack.c.bf16 %v1091, %v1090
        %v1102 = vpack.c.bf16 %v1093, %v1092
        %v1103 = vpack.c.bf16 %v1095, %v1094
        %v1104 = vld [vmem:[%s7] sm:$0xf]
        %v1105 = vld [vmem:[%s7 + $0x4] sm:$0xf]
        %v1106 = vld [vmem:[%s7 + $0x8] sm:$0xf]
        %v1107 = vld [vmem:[%s7 + $0xc] sm:$0xf]
        %v1108 = vld [vmem:[%s7 + $0x10] sm:$0xf]
        %v1109 = vld [vmem:[%s7 + $0x14] sm:$0xf]
        %v1110 = vld [vmem:[%s7 + $0x18] sm:$0xf]
        %v1111 = vld [vmem:[%s7 + $0x1c] sm:$0xf]
        %v1112 = vld [vmem:[%s8] sm:$0x1]
        %v1114 = vlaneseq
        %v1115 = vshrl.u32 %v1114, 7
        %v1116 = vsub.s32 0, %v1115
        %v1117 = vrot.slane %v1112, %v1116
        %v1127 = vunpack.c.l.b16 %v1104
        %v1128 = vunpack.c.l.b16 %v1105
        %v1129 = vunpack.c.l.b16 %v1106
        %v1130 = vunpack.c.l.b16 %v1107
        %v1131 = vunpack.c.l.b16 %v1108
        %v1132 = vunpack.c.l.b16 %v1109
        %v1133 = vunpack.c.l.b16 %v1110
        %v1134 = vunpack.c.l.b16 %v1111
        %v1135 = vpack.c.b16 %v1128, %v1127
        %v1136 = vpack.c.b16 %v1130, %v1129
        %v1137 = vpack.c.b16 %v1132, %v1131
        %v1138 = vpack.c.b16 %v1134, %v1133
        %vm1143 = vcmask 523264
        %v1145 = vsel %vm1143, %v1096, 0
        %v1148 = vsel %vm1143, %v1097, 0
        %v1151 = vsel %vm1143, %v1098, 0
        %v1154 = vsel %vm1143, %v1099, 0
        %v1157 = vsel %vm1143, %v1100, 0
        %v1160 = vsel %vm1143, %v1101, 0
        %v1163 = vsel %vm1143, %v1102, 0
        %v1166 = vsel %vm1143, %v1103, 0
        %1168 = vmatprep.subr.bf16.mxu0 0
        %1169 = vmatpush1.bf16.msra.mxu0 %v1135
        %1170 = vmatprep.subr.bf16.mxu0 0
        %1171 = vmatpush1.bf16.msra.mxu0 %v1136
        %1172 = vmatprep.subr.bf16.mxu0 0
        %1173 = vmatpush1.bf16.msra.mxu0 %v1137
        %1174 = vmatprep.subr.bf16.mxu0 0
        %1175 = vmatpush1.bf16.msra.mxu0 %v1138
        %1176 = vmatprep.subr.bf16.mxu0 0
        %1177 = vmatpush1.bf16.msra.mxu0 0
        %1178 = vmatprep.subr.bf16.mxu0 0
        %1179 = vmatpush1.bf16.msra.mxu0 0
        %1180 = vmatprep.subr.bf16.mxu0 0
        %1181 = vmatpush1.bf16.msra.mxu0 0
        %1182 = vmatprep.subr.bf16.mxu0 0
        %1183 = vmatpush1.bf16.msra.mxu0 0
        %1184 = vmatprep.subr.bf16.mxu0 0
        %1185 = vmatpush1.bf16.msra.mxu0 0
        %1186 = vmatprep.subr.bf16.mxu0 0
        %1187 = vmatpush1.bf16.msra.mxu0 0
        %1188 = vmatprep.subr.bf16.mxu0 0
        %1189 = vmatpush1.bf16.msra.mxu0 0
        %1190 = vmatprep.subr.bf16.mxu0 0
        %1191 = vmatpush1.bf16.msra.mxu0 0
        %1192 = vmatprep.subr.bf16.mxu0 0
        %1193 = vmatpush1.bf16.msra.mxu0 0
        %1194 = vmatprep.subr.bf16.mxu0 0
        %1195 = vmatpush1.bf16.msra.mxu0 0
        %1196 = vmatprep.subr.bf16.mxu0 0
        %1197 = vmatpush1.bf16.msra.mxu0 0
        %1198 = vmatprep.subr.bf16.mxu0 0
        %1199 = vmatpush1.bf16.msra.mxu0 0
        %1200 = vmatprep.mubr.bf16.mxu0 0
        %1201 = vmatmul.mubr.bf16.gmra.mrb[0].mxu0 %v1145
        %v1202 = vpop.f32.mrb[0].mxu0
        %v1203 = vadd.f32 %v1117, %v1202
        %v1204 = vpop.f32.mrb[0].mxu0
        %v1205 = vpop.f32.mrb[0].mxu0
        %v1206 = vadd.f32 %v1117, %v1205
        %v1207 = vpop.f32.mrb[0].mxu0
        %1208 = vmatprep.mubr.bf16.mxu0 0
        %1209 = vmatmul.mubr.bf16.gmra.mrb[0].mxu0 %v1148
        %v1210 = vpop.f32.mrb[0].mxu0
        %v1211 = vadd.f32 %v1117, %v1210
        %v1212 = vpop.f32.mrb[0].mxu0
        %v1213 = vpop.f32.mrb[0].mxu0
        %v1214 = vadd.f32 %v1117, %v1213
        %v1215 = vpop.f32.mrb[0].mxu0
        %1216 = vmatprep.mubr.bf16.mxu0 0
        %1217 = vmatmul.mubr.bf16.gmra.mrb[0].mxu0 %v1151
        %v1218 = vpop.f32.mrb[0].mxu0
        %v1219 = vadd.f32 %v1117, %v1218
        %v1220 = vpop.f32.mrb[0].mxu0
        %v1221 = vpop.f32.mrb[0].mxu0
        %v1222 = vadd.f32 %v1117, %v1221
        %v1223 = vpop.f32.mrb[0].mxu0
        %1224 = vmatprep.mubr.bf16.mxu0 0
        %1225 = vmatmul.mubr.bf16.gmra.mrb[0].mxu0 %v1154
        %v1226 = vpop.f32.mrb[0].mxu0
        %v1227 = vadd.f32 %v1117, %v1226
        %v1228 = vpop.f32.mrb[0].mxu0
        %v1229 = vpop.f32.mrb[0].mxu0
        %v1230 = vadd.f32 %v1117, %v1229
        %v1231 = vpop.f32.mrb[0].mxu0
        %1232 = vmatprep.mubr.bf16.mxu0 0
        %1233 = vmatmul.mubr.bf16.gmra.mrb[0].mxu0 %v1157
        %v1234 = vpop.f32.mrb[0].mxu0
        %v1235 = vadd.f32 %v1117, %v1234
        %v1236 = vpop.f32.mrb[0].mxu0
        %v1237 = vpop.f32.mrb[0].mxu0
        %v1238 = vadd.f32 %v1117, %v1237
        %v1239 = vpop.f32.mrb[0].mxu0
        %1240 = vmatprep.mubr.bf16.mxu0 0
        %1241 = vmatmul.mubr.bf16.gmra.mrb[0].mxu0 %v1160
        %v1242 = vpop.f32.mrb[0].mxu0
        %v1243 = vadd.f32 %v1117, %v1242
        %v1244 = vpop.f32.mrb[0].mxu0
        %v1245 = vpop.f32.mrb[0].mxu0
        %v1246 = vadd.f32 %v1117, %v1245
        %v1247 = vpop.f32.mrb[0].mxu0
        %1248 = vmatprep.mubr.bf16.mxu0 0
        %1249 = vmatmul.mubr.bf16.gmra.mrb[0].mxu0 %v1163
        %v1250 = vpop.f32.mrb[0].mxu0
        %v1251 = vadd.f32 %v1117, %v1250
        %v1252 = vpop.f32.mrb[0].mxu0
        %v1253 = vpop.f32.mrb[0].mxu0
        %v1254 = vadd.f32 %v1117, %v1253
        %v1255 = vpop.f32.mrb[0].mxu0
        %1256 = vmatprep.mubr.bf16.mxu0 0
        %1257 = vmatmul.mubr.bf16.gmra.mrb[0].mxu0 %v1166
        %v1258 = vpop.f32.mrb[0].mxu0
        %v1259 = vadd.f32 %v1117, %v1258
        %v1260 = vpop.f32.mrb[0].mxu0
        %v1261 = vpop.f32.mrb[0].mxu0
        %v1262 = vadd.f32 %v1117, %v1261
        %v1263 = vpop.f32.mrb[0].mxu0
        %1264 = vdwg.mxu0
        %v1265 = vmax.f32 %v1203, 0.0
        %v1266 = vmax.f32 %v1206, 0.0
        %v1267 = vmax.f32 %v1211, 0.0
        %v1268 = vmax.f32 %v1214, 0.0
        %v1269 = vmax.f32 %v1219, 0.0
        %v1270 = vmax.f32 %v1222, 0.0
        %v1271 = vmax.f32 %v1227, 0.0
        %v1272 = vmax.f32 %v1230, 0.0
        %v1273 = vmax.f32 %v1235, 0.0
        %v1274 = vmax.f32 %v1238, 0.0
        %v1275 = vmax.f32 %v1243, 0.0
        %v1276 = vmax.f32 %v1246, 0.0
        %v1277 = vmax.f32 %v1251, 0.0
        %v1278 = vmax.f32 %v1254, 0.0
        %v1279 = vmax.f32 %v1259, 0.0
        %v1280 = vmax.f32 %v1262, 0.0
        %v1281 = vpack.c.bf16 %v1266, %v1265
        %v1282 = vpack.c.bf16 %v1268, %v1267
        %v1283 = vpack.c.bf16 %v1270, %v1269
        %v1284 = vpack.c.bf16 %v1272, %v1271
        %v1285 = vpack.c.bf16 %v1274, %v1273
        %v1286 = vpack.c.bf16 %v1276, %v1275
        %v1287 = vpack.c.bf16 %v1278, %v1277
        %v1288 = vpack.c.bf16 %v1280, %v1279
        %v1289 = vld [vmem:[%s9] sm:$0xf]
        %v1290 = vld [vmem:[%s9 + $0x4] sm:$0xf]
        %v1291 = vld [vmem:[%s10] sm:$0x1]
        %v1293 = vlaneseq
        %v1294 = vshrl.u32 %v1293, 7
        %v1295 = vsub.s32 0, %v1294
        %v1296 = vrot.slane %v1291, %v1295
        %v1300 = vunpack.c.l.b16 %v1289
        %v1301 = vunpack.c.l.b16 %v1290
        %v1302 = vpack.c.b16 %v1301, %v1300
        %vm1304 = vcmask 130048
        %v1306 = vsel %vm1304, %v1281, 0
        %v1309 = vsel %vm1304, %v1282, 0
        %v1312 = vsel %vm1304, %v1283, 0
        %v1315 = vsel %vm1304, %v1284, 0
        %v1318 = vsel %vm1304, %v1285, 0
        %v1321 = vsel %vm1304, %v1286, 0
        %v1324 = vsel %vm1304, %v1287, 0
        %v1327 = vsel %vm1304, %v1288, 0
        %1329 = vmatprep.subr.bf16.mxu0 0
        %1330 = vmatpush1.bf16.msra.mxu0 %v1302
        %1331 = vmatprep.subr.bf16.mxu0 0
        %1332 = vmatpush1.bf16.msra.mxu0 0
        %1333 = vmatprep.subr.bf16.mxu0 0
        %1334 = vmatpush1.bf16.msra.mxu0 0
        %1335 = vmatprep.subr.bf16.mxu0 0
        %1336 = vmatpush1.bf16.msra.mxu0 0
        %1337 = vmatprep.subr.bf16.mxu0 0
        %1338 = vmatpush1.bf16.msra.mxu0 0
        %1339 = vmatprep.subr.bf16.mxu0 0
        %1340 = vmatpush1.bf16.msra.mxu0 0
        %1341 = vmatprep.subr.bf16.mxu0 0
        %1342 = vmatpush1.bf16.msra.mxu0 0
        %1343 = vmatprep.subr.bf16.mxu0 0
        %1344 = vmatpush1.bf16.msra.mxu0 0
        %1345 = vmatprep.subr.bf16.mxu0 0
        %1346 = vmatpush1.bf16.msra.mxu0 0
        %1347 = vmatprep.subr.bf16.mxu0 0
        %1348 = vmatpush1.bf16.msra.mxu0 0
        %1349 = vmatprep.subr.bf16.mxu0 0
        %1350 = vmatpush1.bf16.msra.mxu0 0
        %1351 = vmatprep.subr.bf16.mxu0 0
        %1352 = vmatpush1.bf16.msra.mxu0 0
        %1353 = vmatprep.subr.bf16.mxu0 0
        %1354 = vmatpush1.bf16.msra.mxu0 0
        %1355 = vmatprep.subr.bf16.mxu0 0
        %1356 = vmatpush1.bf16.msra.mxu0 0
        %1357 = vmatprep.subr.bf16.mxu0 0
        %1358 = vmatpush1.bf16.msra.mxu0 0
        %1359 = vmatprep.subr.bf16.mxu0 0
        %1360 = vmatpush1.bf16.msra.mxu0 0
        %1361 = vmatprep.mubr.bf16.mxu0 0
        %1362 = vmatmul.mubr.bf16.gmra.mrb[0].mxu0 %v1306
        %v1363 = vpop.f32.mrb[0].mxu0
        %v1364 = vadd.f32 %v1296, %v1363
        %v1365 = vpop.f32.mrb[0].mxu0
        %v1366 = vpop.f32.mrb[0].mxu0
        %v1367 = vadd.f32 %v1296, %v1366
        %v1368 = vpop.f32.mrb[0].mxu0
        %1369 = vmatprep.mubr.bf16.mxu0 0
        %1370 = vmatmul.mubr.bf16.gmra.mrb[0].mxu0 %v1309
        %v1371 = vpop.f32.mrb[0].mxu0
        %v1372 = vadd.f32 %v1296, %v1371
        %v1373 = vpop.f32.mrb[0].mxu0
        %v1374 = vpop.f32.mrb[0].mxu0
        %v1375 = vadd.f32 %v1296, %v1374
        %v1376 = vpop.f32.mrb[0].mxu0
        %1377 = vmatprep.mubr.bf16.mxu0 0
        %1378 = vmatmul.mubr.bf16.gmra.mrb[0].mxu0 %v1312
        %v1379 = vpop.f32.mrb[0].mxu0
        %v1380 = vadd.f32 %v1296, %v1379
        %v1381 = vpop.f32.mrb[0].mxu0
        %v1382 = vpop.f32.mrb[0].mxu0
        %v1383 = vadd.f32 %v1296, %v1382
        %v1384 = vpop.f32.mrb[0].mxu0
        %1385 = vmatprep.mubr.bf16.mxu0 0
        %1386 = vmatmul.mubr.bf16.gmra.mrb[0].mxu0 %v1315
        %v1387 = vpop.f32.mrb[0].mxu0
        %v1388 = vadd.f32 %v1296, %v1387
        %v1389 = vpop.f32.mrb[0].mxu0
        %v1390 = vpop.f32.mrb[0].mxu0
        %v1391 = vadd.f32 %v1296, %v1390
        %v1392 = vpop.f32.mrb[0].mxu0
        %1393 = vmatprep.mubr.bf16.mxu0 0
        %1394 = vmatmul.mubr.bf16.gmra.mrb[0].mxu0 %v1318
        %v1395 = vpop.f32.mrb[0].mxu0
        %v1396 = vadd.f32 %v1296, %v1395
        %v1397 = vpop.f32.mrb[0].mxu0
        %v1398 = vpop.f32.mrb[0].mxu0
        %v1399 = vadd.f32 %v1296, %v1398
        %v1400 = vpop.f32.mrb[0].mxu0
        %1401 = vmatprep.mubr.bf16.mxu0 0
        %1402 = vmatmul.mubr.bf16.gmra.mrb[0].mxu0 %v1321
        %v1403 = vpop.f32.mrb[0].mxu0
        %v1404 = vadd.f32 %v1296, %v1403
        %v1405 = vpop.f32.mrb[0].mxu0
        %v1406 = vpop.f32.mrb[0].mxu0
        %v1407 = vadd.f32 %v1296, %v1406
        %v1408 = vpop.f32.mrb[0].mxu0
        %1409 = vmatprep.mubr.bf16.mxu0 0
        %1410 = vmatmul.mubr.bf16.gmra.mrb[0].mxu0 %v1324
        %v1411 = vpop.f32.mrb[0].mxu0
        %v1412 = vadd.f32 %v1296, %v1411
        %v1413 = vpop.f32.mrb[0].mxu0
        %v1414 = vpop.f32.mrb[0].mxu0
        %v1415 = vadd.f32 %v1296, %v1414
        %v1416 = vpop.f32.mrb[0].mxu0
        %1417 = vmatprep.mubr.bf16.mxu0 0
        %1418 = vmatmul.mubr.bf16.gmra.mrb[0].mxu0 %v1327
        %v1419 = vpop.f32.mrb[0].mxu0
        %v1420 = vadd.f32 %v1296, %v1419
        %v1421 = vpop.f32.mrb[0].mxu0
        %v1422 = vpop.f32.mrb[0].mxu0
        %v1423 = vadd.f32 %v1296, %v1422
        %v1424 = vpop.f32.mrb[0].mxu0
        %1425 = vdwg.mxu0
        %v1426 = vpack.c.bf16 %v1367, %v1364
        %v1427 = vpack.c.bf16 %v1375, %v1372
        %v1428 = vpack.c.bf16 %v1383, %v1380
        %v1429 = vpack.c.bf16 %v1391, %v1388
        %v1430 = vpack.c.bf16 %v1399, %v1396
        %v1431 = vpack.c.bf16 %v1407, %v1404
        %v1432 = vpack.c.bf16 %v1415, %v1412
        %v1433 = vpack.c.bf16 %v1423, %v1420
        %v1442 = vunpack.c.l.b16 %v1426
        %v1443 = vunpack.c.h.b16 %v1426
        %v1444 = vunpack.c.l.b16 %v1427
        %v1445 = vunpack.c.h.b16 %v1427
        %v1446 = vunpack.c.l.b16 %v1428
        %v1447 = vunpack.c.h.b16 %v1428
        %v1448 = vunpack.c.l.b16 %v1429
        %v1449 = vunpack.c.h.b16 %v1429
        %v1450 = vunpack.c.l.b16 %v1430
        %v1451 = vunpack.c.h.b16 %v1430
        %v1452 = vunpack.c.l.b16 %v1431
        %v1453 = vunpack.c.h.b16 %v1431
        %v1454 = vunpack.c.l.b16 %v1432
        %v1455 = vunpack.c.h.b16 %v1432
        %v1456 = vunpack.c.l.b16 %v1433
        %v1457 = vunpack.c.h.b16 %v1433
        %v1458 = vpack.c.b16 %v1442, %v1442
        %v1459 = vpack.c.b16 %v1443, %v1443
        %v1460 = vpack.c.b16 %v1444, %v1444
        %v1461 = vpack.c.b16 %v1445, %v1445
        %v1462 = vpack.c.b16 %v1446, %v1446
        %v1463 = vpack.c.b16 %v1447, %v1447
        %v1464 = vpack.c.b16 %v1448, %v1448
        %v1465 = vpack.c.b16 %v1449, %v1449
        %v1466 = vpack.c.b16 %v1450, %v1450
        %v1467 = vpack.c.b16 %v1451, %v1451
        %v1468 = vpack.c.b16 %v1452, %v1452
        %v1469 = vpack.c.b16 %v1453, %v1453
        %v1470 = vpack.c.b16 %v1454, %v1454
        %v1471 = vpack.c.b16 %v1455, %v1455
        %v1472 = vpack.c.b16 %v1456, %v1456
        %v1473 = vpack.c.b16 %v1457, %v1457
        %1490 = vst [vmem:[%s380] sm:$0xf] %v1458
        %1491 = vst [vmem:[%s380 + $0x4] sm:$0xf] %v1459
        %1492 = vst [vmem:[%s380 + $0x8] sm:$0xf] %v1460
        %1493 = vst [vmem:[%s380 + $0xc] sm:$0xf] %v1461
        %1494 = vst [vmem:[%s380 + $0x10] sm:$0xf] %v1462
        %1495 = vst [vmem:[%s380 + $0x14] sm:$0xf] %v1463
        %1496 = vst [vmem:[%s380 + $0x18] sm:$0xf] %v1464
        %1497 = vst [vmem:[%s380 + $0x1c] sm:$0xf] %v1465
        %1498 = vst [vmem:[%s380 + $0x20] sm:$0xf] %v1466
        %1499 = vst [vmem:[%s380 + $0x24] sm:$0xf] %v1467
        %1500 = vst [vmem:[%s380 + $0x28] sm:$0xf] %v1468
        %1501 = vst [vmem:[%s380 + $0x2c] sm:$0xf] %v1469
        %1502 = vst [vmem:[%s380 + $0x30] sm:$0xf] %v1470
        %1503 = vst [vmem:[%s380 + $0x34] sm:$0xf] %v1471
        %1504 = vst [vmem:[%s380 + $0x38] sm:$0xf] %v1472
        %1505 = vst [vmem:[%s380 + $0x3c] sm:$0xf] %v1473
        %s1506 = sand.u32 %s269, 1
        %s1507 = scalar_lea.sflag [#allocation3], %s1506
        %s1508 = sand.u32 %s269, 1
        %s1509 = smul.addr %s1508, 64
        %s1510 = scalar_lea.vmem [#allocation2], %s1509
        // Predicated region
        $region65: #{tpu_custom_call.1} parent=63 // pred_check
          %p1511 = pneg %p279
        $region66: #{tpu_custom_call.1} parent=63 // pred_check_branch
          %1513 = sbr.rel (%p1511) target = $region68
        $region67: #{tpu_custom_call.1} parent=63 // pred_region
          %s1514 = smul.u32 16, %s25
          %s1516 = ssub.s32 1024, 1024
          %1517 = vsyncadd %s1507, %s1516
          %s1518 = smul.addr %s1514, 64
          %s1519 = scalar_lea.hbm %s11, %s1518
          %s1520 = sshll.u32 %s1510, 4
          %s1521 = int_to_ptr.vmem [resolvable:$true] %s1520
          %1526 = dma.vmem_to_hbm [thread:$0]  %s1521, 1024, %s1519, %s1507, 64, 64, 4
        $region68: #{tpu_custom_call.1} parent=63 // pred_fallthru
          _
      $region64: #{tpu_custom_call.1} parent=5 // pred_fallthru
        _
      %p1527 = scmp.le.s32.totalorder 2, %s20
      // Predicated region
      $region69: #{tpu_custom_call.1} parent=5 // pred_check
        %p1528 = pneg %p1527
      $region70: #{tpu_custom_call.1} parent=5 // pred_check_branch
        %1530 = sbr.rel (%p1528) target = $region72
      $region71: #{tpu_custom_call.1} parent=5 // pred_region
        %s1531 = ssub.s32 %s20, 2
        // Predicated region
        $region73: #{tpu_custom_call.1} parent=71 // pred_check
          %p1532 = pneg %p285
        $region74: #{tpu_custom_call.1} parent=71 // pred_check_branch
          %1534 = sbr.rel (%p1532) target = $region76
        $region75: #{tpu_custom_call.1} parent=71 // pred_region
          %s1535 = sand.u32 %s270, 1
          %s1536 = scalar_lea.sflag [#allocation3], %s1535
          %s1537 = sand.u32 %s270, 1
          %s1538 = smul.addr %s1537, 64
          %s1539 = scalar_lea.vmem [#allocation2], %s1538
          %1540 = dma.done %s1536, 1024
        $region76: #{tpu_custom_call.1} parent=71 // pred_fallthru
          _
      $region72: #{tpu_custom_call.1} parent=5 // pred_fallthru
        _
    $region6: #{tpu_custom_call.1} parent=1 // loop_footer
      %s24 = sadd.s32 1, %s20
    $region7: #{tpu_custom_call.1} parent=1 // loop_footer_branch
      %19 = sbr.rel target = $region3
    $region8: #{tpu_custom_call.1} parent=1 // loop_exit
      _
    %1541 = vsyncpa [#allocation3], 1
    %s1542 = scalar_lea.sflag [#allocation3], 1
    %1543 = vsyncpa %s1542, 1

</llo_original>
